<compile_context>
chip_gen: v6e
topology: v6e:2x2x1
jax: 0.10.0
libtpu: 0.0.40
codegen_flags: <defaults>
</compile_context>

<pallas_src>
import jax
import jax.numpy as jnp
from jax.experimental import pallas as pl
from jax.experimental.pallas import tpu as pltpu


def _linear_bias_kernel(x_ref, w_ref, b_ref, o_ref):
    # Full-K single-shot matmul for this output-column tile; bias broadcasts
    # over the batch rows.  f32 accumulation on the MXU.
    o_ref[...] = (
        jnp.dot(x_ref[...], w_ref[...], preferred_element_type=jnp.float32)
        + b_ref[...]
    ).astype(o_ref.dtype)


def _pick_tn(D):
    """Output-column tile width: multiple of 128, prefer >=2 grid steps so the
    N axis can be split across TensorCores (v7x megacore)."""
    for tn in (1024, 512, 256, 128):
        if D % tn == 0 and D // tn >= 2:
            return tn
    # Fall back to a single full-N block (block dim == full array dim is
    # always legal, regardless of divisibility).
    return D


@jax.jit
def _pallas_linear(x_flat, w_t, bias2d):
    """y = x_flat @ w_t + bias, computed with a Pallas TPU kernel.

    x_flat:  (B, D) float32
    w_t:     (D, D) float32   (already transposed: columns are output features)
    bias2d:  (1, D) float32
    """
    B, D = x_flat.shape
    assert w_t.shape == (D, D)
    assert bias2d.shape == (1, D)

    tn = _pick_tn(D)
    grid = (D // tn,)

    out = pl.pallas_call(
        _linear_bias_kernel,
        out_shape=jax.ShapeDtypeStruct((B, D), x_flat.dtype),
        grid_spec=pltpu.PrefetchScalarGridSpec(
            num_scalar_prefetch=0,
            grid=grid,
            in_specs=[
                # x: full (B, D) block, resident across the parallel N axis.
                pl.BlockSpec((B, D), lambda j: (0, 0)),
                # w: full-K, tn-wide column slab per step.
                pl.BlockSpec((D, tn), lambda j: (0, j)),
                # bias: matching tn-wide slab.
                pl.BlockSpec((1, tn), lambda j: (0, j)),
            ],
            out_specs=pl.BlockSpec((B, tn), lambda j: (0, j)),
        ),
        compiler_params=pltpu.CompilerParams(
            dimension_semantics=("parallel",),
        ),
        cost_estimate=pl.CostEstimate(
            flops=2 * B * D * D,
            transcendentals=0,
            bytes_accessed=D * D * 4 + 2 * B * D * 4 + D * 4,
        ),
    )(x_flat, w_t, bias2d)

    return out


class FCWrapperPallas:
    """JAX/Pallas equivalent of FCWrapper(nn.Linear(D, D))."""

    def __init__(self, weight, bias):
        # weight: (out_features, in_features) — PyTorch nn.Linear convention.
        self.w_t = jnp.asarray(weight, dtype=jnp.float32).T   # (D_in, D_out)
        self.bias2d = jnp.asarray(bias, dtype=jnp.float32).reshape(1, -1)

    def __call__(self, x, logpx=None):
        shape = x.shape
        x_flat = x.reshape(shape[0], -1)           # == torch .view(B, -1)
        y_flat = _pallas_linear(x_flat, self.w_t, self.bias2d)
        y = y_flat.reshape(shape)
        if logpx is None:
            return y
        return y, logpx


if __name__ == "__main__":
    key = jax.random.PRNGKey(0)
    kx, kw, kb = jax.random.split(key, 3)

    B, C, H, W = 2, 4, 16, 16
    D = C * H * W

    x = jax.random.normal(kx, (B, C, H, W), dtype=jnp.float32)
    # Deterministic parameter init mimicking nn.Linear default scale.
    bound = 1.0 / jnp.sqrt(D)
    weight = jax.random.uniform(kw, (D, D), minval=-bound, maxval=bound,
                                dtype=jnp.float32)
    bias = jax.random.uniform(kb, (D,), minval=-bound, maxval=bound,
                              dtype=jnp.float32)

    wrapper = FCWrapperPallas(weight, bias)

    y = wrapper(x)
    y = jax.block_until_ready(y)

    # Reference check (plain JAX) for the forward semantics.
    y_ref = (x.reshape(B, -1) @ weight.T + bias).reshape(B, C, H, W)
    assert y.shape == x.shape
    assert jnp.allclose(y, y_ref, atol=1e-4, rtol=1e-4)

    # Exercise the logpx path too.
    logpx = jnp.zeros((B, 1), dtype=jnp.float32)
    y2, logpy = wrapper(x, logpx)
    jax.block_until_ready((y2, logpy))
    assert y2.shape == x.shape and logpy.shape == logpx.shape
    assert jnp.allclose(y2, y_ref, atol=1e-4, rtol=1e-4)

    print("KERNEL_OK")
</pallas_src>

<mosaic_0001>
module attributes {stable_mosaic.version = 11 : i64} {
  func.func @_linear_bias_kernel(%arg0: i32, %arg1: memref<2x1024xf32, #tpu.memory_space<vmem>>, %arg2: memref<1024x512xf32, #tpu.memory_space<vmem>>, %arg3: memref<1x512xf32, #tpu.memory_space<vmem>>, %arg4: memref<2x512xf32, #tpu.memory_space<vmem>>) attributes {dimension_semantics = [#tpu.dimension_semantics<parallel>], iteration_bounds = array<i64: 2>, scalar_prefetch = 0 : i64, scratch_operands = 0 : i64, tpu.core_type = #tpu.core_type<tc>, window_params = [{pipeline_mode = #tpu.pipeline_mode<synchronous>, transform_indices = @transform_0, window_bounds = array<i64: 2, 1024>}, {transform_indices = @transform_1, window_bounds = array<i64: 1024, 512>}, {transform_indices = @transform_2, window_bounds = array<i64: 1, 512>}, {transform_indices = @transform_3, window_bounds = array<i64: 2, 512>}]} {
    %c0 = arith.constant 0 : index
    %c0_0 = arith.constant 0 : index
    %0 = vector.load %arg1[%c0, %c0_0] : memref<2x1024xf32, #tpu.memory_space<vmem>>, vector<2x1024xf32>
    %c0_1 = arith.constant 0 : index
    %c0_2 = arith.constant 0 : index
    %1 = vector.load %arg2[%c0_1, %c0_2] : memref<1024x512xf32, #tpu.memory_space<vmem>>, vector<1024x512xf32>
    %cst = arith.constant dense<0.000000e+00> : vector<2x512xf32>
    %2 = tpu.matmul %0, %1, %cst {dimension_numbers = #tpu.dot_dimension_numbers<[1], [0], [0], [1], [0, 0, 1, 1], [], []>} : vector<2x1024xf32>, vector<1024x512xf32>, vector<2x512xf32> -> vector<2x512xf32>
    %c0_3 = arith.constant 0 : index
    %c0_4 = arith.constant 0 : index
    %3 = vector.load %arg3[%c0_3, %c0_4] : memref<1x512xf32, #tpu.memory_space<vmem>>, vector<1x512xf32>
    %4 = vector.broadcast %3 : vector<1x512xf32> to vector<2x512xf32>
    %5 = arith.addf %2, %4 : vector<2x512xf32>
    %c0_5 = arith.constant 0 : index
    %c0_6 = arith.constant 0 : index
    %6 = vector.load %arg4[%c0_5, %c0_6] : memref<2x512xf32, #tpu.memory_space<vmem>>, vector<2x512xf32>
    tpu.vector_store %arg4[%c0_5, %c0_6], %5 {strides = array<i32>} : memref<2x512xf32, #tpu.memory_space<vmem>>, vector<2x512xf32>,
    return
  }
  func.func @transform_0(%arg0: i32) -> (i32, i32) {
    %c0_i32 = arith.constant 0 : i32
    %c0_i32_0 = arith.constant 0 : i32
    %c0_i32_1 = arith.constant 0 : i32
    return %c0_i32, %c0_i32_0 : i32, i32
  }
  func.func @transform_1(%arg0: i32) -> (i32, i32) {
    %c0_i32 = arith.constant 0 : i32
    %c0_i32_0 = arith.constant 0 : i32
    return %c0_i32, %arg0 : i32, i32
  }
  func.func @transform_2(%arg0: i32) -> (i32, i32) {
    %c0_i32 = arith.constant 0 : i32
    %c0_i32_0 = arith.constant 0 : i32
    return %c0_i32, %arg0 : i32, i32
  }
  func.func @transform_3(%arg0: i32) -> (i32, i32) {
    %c0_i32 = arith.constant 0 : i32
    %c0_i32_0 = arith.constant 0 : i32
    return %c0_i32, %arg0 : i32, i32
  }
}

</mosaic_0001>

<llo_original>
// kernel: _pallas_linear.1
$region0: #{_pallas_linear.1}
  #allocation0 [shape = 'u32[]', space=smem, size = 0x4, offset = 0x4, fixed_abs, tag = 'smem constant byte address 0x4 - core index']
  #allocation1 [shape = 'u32[144,128]{1,0:T(1,128)}', space=vmem, size = 0x12000, scoped, tag = 'internal scratch']
  %s0 = inlined_call_operand.hbm [shape: f32[2,1024], index: 0, kind: input, shape index: {}]
  %s1 = inlined_call_operand.hbm [shape: f32[1024,1024], index: 1, kind: input, shape index: {}]
  %s2 = inlined_call_operand.hbm [shape: f32[1,1024], index: 2, kind: input, shape index: {}]
  %s3 = inlined_call_operand.hbm [shape: f32[2,1024], index: 3, kind: output, shape index: {}]
  %s4 = sld [smem:[#allocation0]]
  $region57: #{_pallas_linear.1} parent=0
    _
  %s6 = ssub.s32 1, %s4
  %s7 = scalar_select 0, %s6, %s4
  $region1: #{_pallas_linear.1} parent=0
    #allocation2 [shape = 'u8[8192]{0}', space=vmem, size = 0x2000, scoped, tag = 'input window, operand 0, single buffered']
    #allocation3 [shape = 's32[2]{0}', space=sflag, size = 0x8, scoped, tag = 'scoped memory for _pallas_linear.1']
    #allocation4 [shape = 's32[2]{0}', space=sflag, size = 0x8, scoped, tag = 'scoped memory for _pallas_linear.1']
    #allocation5 [shape = 'u8[4194304]{0}', space=vmem, size = 0x400000, scoped, tag = 'input window, operand 1']
    #allocation6 [shape = 's32[2]{0}', space=sflag, size = 0x8, scoped, tag = 'scoped memory for _pallas_linear.1']
    #allocation7 [shape = 'u8[4096]{0}', space=vmem, size = 0x1000, scoped, tag = 'input window, operand 2']
    #allocation8 [shape = 'u8[8192]{0}', space=vmem, size = 0x2000, scoped, tag = 'output window, operand 0']
    %8 = vsyncpa [#allocation3], 0
    %9 = vsyncpa [#allocation6], 0
    %s10 = scalar_lea.sflag [#allocation6], 1
    %11 = vsyncpa %s10, 0
    %12 = vsyncpa [#allocation4], 0
    %s13 = scalar_lea.sflag [#allocation4], 1
    %14 = vsyncpa %s13, 0
    loop: start=0, step=1, limit=4
    $region2: #{_pallas_linear.1} parent=1 // loop_pre_header
      _
    $region3: #{_pallas_linear.1} parent=1 // loop_header
      %s16 = sphi 0, %s20
      %p17 = scmp.ge.s32.totalorder %s16, 4
      %s24 = sphi 0, %s24
      %s26 = sphi 0, %s24
      %s27 = sphi 0, %s26
      %s41 = sphi 0, %s27
      %s47 = sphi 0, %s49
      %s50 = sphi 0, %s47
      %s51 = sphi 0, %s50
      %s67 = sphi 0, %s51
      %s73 = sphi 0, %s75
      %s76 = sphi 0, %s73
      %s77 = sphi 0, %s76
      %s93 = sphi 0, %s77
      %s99 = sphi 0, %s101
      %s102 = sphi 0, %s99
      %s103 = sphi 0, %s102
      %s119 = sphi 0, %s103
    $region4: #{_pallas_linear.1} parent=1 // loop_header_branch
      %19 = sbr.rel (%p17) target = $region8
    $region5: #{_pallas_linear.1} parent=1 // loop_body
      %s21 = ssub.s32 %s16, 1
      %s22 = ssub.s32 %s16, 2
      %s23 = sadd.s32 %s16, 1
      %s25 = sadd.s32 %s24, 1
      %p28 = scmp.eq.s32.totalorder %s16, 1
      %p29 = scmp.ne.s32.totalorder %s24, %s26
      %p30 = scmp.eq.s32.totalorder %s16, 0
      %p31 = por %p29, %p30
      %p32 = scmp.ne.s32.totalorder %s24, %s26
      %p33 = scmp.eq.s32.totalorder %s21, 1
      %p34 = por %p32, %p33
      %p35 = scmp.ne.s32.totalorder %s26, %s27
      %p36 = scmp.eq.s32.totalorder %s21, 0
      %p37 = por %p35, %p36
      %p38 = scmp.ne.s32.totalorder %s26, %s27
      %p39 = scmp.eq.s32.totalorder %s22, 1
      %p40 = por %p38, %p39
      %p42 = scmp.ne.s32.totalorder %s27, %s41
      %p43 = scmp.eq.s32.totalorder %s22, 0
      %p44 = por %p42, %p43
      %s45 = ssub.s32 %s16, %s23
      %p46 = scmp.eq.s32.totalorder %s45, 0
      %s48 = sadd.s32 %s47, 1
      %s49 = scalar_select %p46, %s47, %s48
      %p52 = pneg %p46
      %p53 = scmp.eq.s32.totalorder %s16, 1
      %p54 = por %p52, %p53
      %p55 = scmp.ne.s32.totalorder %s47, %s50
      %p56 = scmp.eq.s32.totalorder %s16, 0
      %p57 = por %p55, %p56
      %p58 = scmp.ne.s32.totalorder %s47, %s50
      %p59 = scmp.eq.s32.totalorder %s21, 1
      %p60 = por %p58, %p59
      %p61 = scmp.ne.s32.totalorder %s50, %s51
      %p62 = scmp.eq.s32.totalorder %s21, 0
      %p63 = por %p61, %p62
      %p64 = scmp.ne.s32.totalorder %s50, %s51
      %p65 = scmp.eq.s32.totalorder %s22, 1
      %p66 = por %p64, %p65
      %p68 = scmp.ne.s32.totalorder %s51, %s67
      %p69 = scmp.eq.s32.totalorder %s22, 0
      %p70 = por %p68, %p69
      %s71 = ssub.s32 %s16, %s23
      %p72 = scmp.eq.s32.totalorder %s71, 0
      %s74 = sadd.s32 %s73, 1
      %s75 = scalar_select %p72, %s73, %s74
      %p78 = pneg %p72
      %p79 = scmp.eq.s32.totalorder %s16, 1
      %p80 = por %p78, %p79
      %p81 = scmp.ne.s32.totalorder %s73, %s76
      %p82 = scmp.eq.s32.totalorder %s16, 0
      %p83 = por %p81, %p82
      %p84 = scmp.ne.s32.totalorder %s73, %s76
      %p85 = scmp.eq.s32.totalorder %s21, 1
      %p86 = por %p84, %p85
      %p87 = scmp.ne.s32.totalorder %s76, %s77
      %p88 = scmp.eq.s32.totalorder %s21, 0
      %p89 = por %p87, %p88
      %p90 = scmp.ne.s32.totalorder %s76, %s77
      %p91 = scmp.eq.s32.totalorder %s22, 1
      %p92 = por %p90, %p91
      %p94 = scmp.ne.s32.totalorder %s77, %s93
      %p95 = scmp.eq.s32.totalorder %s22, 0
      %p96 = por %p94, %p95
      %s97 = ssub.s32 %s16, %s23
      %p98 = scmp.eq.s32.totalorder %s97, 0
      %s100 = sadd.s32 %s99, 1
      %s101 = scalar_select %p98, %s99, %s100
      %p104 = pneg %p98
      %p105 = scmp.eq.s32.totalorder %s16, 1
      %p106 = por %p104, %p105
      %p107 = scmp.ne.s32.totalorder %s99, %s102
      %p108 = scmp.eq.s32.totalorder %s16, 0
      %p109 = por %p107, %p108
      %p110 = scmp.ne.s32.totalorder %s99, %s102
      %p111 = scmp.eq.s32.totalorder %s21, 1
      %p112 = por %p110, %p111
      %p113 = scmp.ne.s32.totalorder %s102, %s103
      %p114 = scmp.eq.s32.totalorder %s21, 0
      %p115 = por %p113, %p114
      %p116 = scmp.ne.s32.totalorder %s102, %s103
      %p117 = scmp.eq.s32.totalorder %s22, 1
      %p118 = por %p116, %p117
      %p120 = scmp.ne.s32.totalorder %s103, %s119
      %p121 = scmp.eq.s32.totalorder %s22, 0
      %p122 = por %p120, %p121
      %p123 = scmp.le.s32.totalorder 1, %s16
      %p124 = scmp.lt.s32.totalorder %s16, 3
      %p125 = pnand %p123, %p124
      %p126 = pneg %p125
      // Predicated region
      $region9: #{_pallas_linear.1} parent=5 // pred_check
        _
      $region10: #{_pallas_linear.1} parent=5 // pred_check_branch
        %128 = sbr.rel (%p125) target = $region12
      $region11: #{_pallas_linear.1} parent=5 // pred_region
        %s129 = ssub.s32 %s16, 1
        // Predicated region
        $region13: #{_pallas_linear.1} parent=11 // pred_check
          %p130 = pneg %p37
        $region14: #{_pallas_linear.1} parent=11 // pred_check_branch
          %132 = sbr.rel (%p130) target = $region16
        $region15: #{_pallas_linear.1} parent=11 // pred_region
          %s134 = ssub.s32 256, 256
          %135 = vsyncadd [#allocation3], %s134
          %s137 = sshll.u32 [#allocation2], 4
          %s138 = int_to_ptr.vmem [resolvable:$true] %s137
          %140 = dma.hbm_to_vmem [thread:$0]  %s0, 256, %s138, [#allocation3]
        $region16: #{_pallas_linear.1} parent=11 // pred_fallthru
          _
      $region12: #{_pallas_linear.1} parent=5 // pred_fallthru
        _
      %p141 = scmp.lt.s32.totalorder %s16, 2
      // Predicated region
      $region17: #{_pallas_linear.1} parent=5 // pred_check
        %p142 = pneg %p141
      $region18: #{_pallas_linear.1} parent=5 // pred_check_branch
        %144 = sbr.rel (%p142) target = $region20
      $region19: #{_pallas_linear.1} parent=5 // pred_region
        // Predicated region
        $region21: #{_pallas_linear.1} parent=19 // pred_check
          %p145 = pneg %p57
        $region22: #{_pallas_linear.1} parent=19 // pred_check_branch
          %147 = sbr.rel (%p145) target = $region24
        $region23: #{_pallas_linear.1} parent=19 // pred_region
          %s148 = sand.u32 %s16, 1
          %s149 = scalar_lea.sflag [#allocation6], %s148
          %s150 = sand.u32 %s47, 1
          %s151 = smul.addr %s150, 4096
          %s152 = scalar_lea.vmem [#allocation5], %s151
          %s153 = smul.u32 4, %s16
          %s155 = ssub.s32 65536, 65536
          %156 = vsyncadd %s149, %s155
          %s157 = smul.addr %s153, 128
          %s158 = scalar_lea.hbm %s1, %s157
          %s159 = sshll.u32 %s152, 4
          %s160 = int_to_ptr.vmem [resolvable:$true] %s159
          %165 = dma.hbm_to_vmem [thread:$0]  %s158, 65536, %s160, %s149, 1024, 512, 32
        $region24: #{_pallas_linear.1} parent=19 // pred_fallthru
          _
        // Predicated region
        $region25: #{_pallas_linear.1} parent=19 // pred_check
          %p166 = pneg %p83
        $region26: #{_pallas_linear.1} parent=19 // pred_check_branch
          %168 = sbr.rel (%p166) target = $region28
        $region27: #{_pallas_linear.1} parent=19 // pred_region
          %s169 = sand.u32 %s16, 1
          %s170 = scalar_lea.sflag [#allocation6], %s169
          %s171 = sand.u32 %s73, 1
          %s172 = smul.addr %s171, 4
          %s173 = scalar_lea.vmem [#allocation7], %s172
          %s174 = smul.u32 4, %s16
          %s176 = ssub.s32 64, 64
          %177 = vsyncadd %s170, %s176
          %s178 = smul.addr %s174, 16
          %s179 = scalar_lea.hbm %s2, %s178
          %s181 = sshll.u32 %s173, 4
          %s182 = int_to_ptr.vmem [resolvable:$true] %s181
          %184 = dma.hbm_to_vmem [thread:$0]  %s179, 64, %s182, %s170
        $region28: #{_pallas_linear.1} parent=19 // pred_fallthru
          _
      $region20: #{_pallas_linear.1} parent=5 // pred_fallthru
        _
      %p185 = scmp.le.s32.totalorder 1, %s16
      %p186 = scmp.lt.s32.totalorder %s16, 3
      %p187 = pnand %p185, %p186
      %p188 = pneg %p187
      // Predicated region
      $region29: #{_pallas_linear.1} parent=5 // pred_check
        _
      $region30: #{_pallas_linear.1} parent=5 // pred_check_branch
        %190 = sbr.rel (%p187) target = $region32
      $region31: #{_pallas_linear.1} parent=5 // pred_region
        %s191 = ssub.s32 %s16, 1
        // Predicated region
        $region33: #{_pallas_linear.1} parent=31 // pred_check
          %p192 = pneg %p37
        $region34: #{_pallas_linear.1} parent=31 // pred_check_branch
          %194 = sbr.rel (%p192) target = $region36
        $region35: #{_pallas_linear.1} parent=31 // pred_region
          %195 = dma.done [#allocation3], 256
        $region36: #{_pallas_linear.1} parent=31 // pred_fallthru
          _
        %s196 = sand.u32 %s21, 1
        %s197 = scalar_lea.sflag [#allocation6], %s196
        %s198 = sand.u32 %s50, 1
        %s199 = smul.addr %s198, 4096
        %s200 = scalar_lea.vmem [#allocation5], %s199
        // Predicated region
        $region37: #{_pallas_linear.1} parent=31 // pred_check
          %p201 = pneg %p63
        $region38: #{_pallas_linear.1} parent=31 // pred_check_branch
          %203 = sbr.rel (%p201) target = $region40
        $region39: #{_pallas_linear.1} parent=31 // pred_region
          %204 = dma.done %s197, 65536
        $region40: #{_pallas_linear.1} parent=31 // pred_fallthru
          _
        %s205 = sand.u32 %s21, 1
        %s206 = scalar_lea.sflag [#allocation6], %s205
        %s207 = sand.u32 %s76, 1
        %s208 = smul.addr %s207, 4
        %s209 = scalar_lea.vmem [#allocation7], %s208
        // Predicated region
        $region41: #{_pallas_linear.1} parent=31 // pred_check
          %p210 = pneg %p89
        $region42: #{_pallas_linear.1} parent=31 // pred_check_branch
          %212 = sbr.rel (%p210) target = $region44
        $region43: #{_pallas_linear.1} parent=31 // pred_region
          %213 = dma.done %s206, 64
        $region44: #{_pallas_linear.1} parent=31 // pred_fallthru
          _
        %p214 = pneg %p37
        %p215 = pneg %p34
        %s216 = sand.u32 %s21, 1
        %s217 = scalar_lea.sflag [#allocation6], %s216
        %s218 = sand.u32 %s50, 1
        %s219 = smul.addr %s218, 4096
        %s220 = scalar_lea.vmem [#allocation5], %s219
        %p221 = pneg %p63
        %p222 = pneg %p60
        %s223 = sand.u32 %s21, 1
        %s224 = scalar_lea.sflag [#allocation6], %s223
        %s225 = sand.u32 %s76, 1
        %s226 = smul.addr %s225, 4
        %s227 = scalar_lea.vmem [#allocation7], %s226
        %p228 = pneg %p89
        %p229 = pneg %p86
        %p230 = pneg %p115
        %p231 = pneg %p112
        %s232 = sand.u32 %s102, 1
        %s233 = scalar_lea.sflag [#allocation4], %s232
        %s234 = sand.u32 %s102, 1
        %s235 = smul.addr %s234, 8
        %s236 = scalar_lea.vmem [#allocation8], %s235
        %s237 = smul.u32 4, %s21
        %s238 = smul.u32 4, %s21
        %s239 = smul.u32 4, %s21
        %v240 = vld [vmem:[#allocation2] sm:$0xff]
        %v241 = vld [vmem:[#allocation2 + $0x8] sm:$0xff]
        %v242 = vld [vmem:[%s200] sm:$0xff]
        %v243 = vld [vmem:[%s200 + $0x8] sm:$0xff]
        %v244 = vld [vmem:[%s200 + $0x10] sm:$0xff]
        %v245 = vld [vmem:[%s200 + $0x18] sm:$0xff]
        %v246 = vld [vmem:[%s200 + $0x20] sm:$0xff]
        %v247 = vld [vmem:[%s200 + $0x28] sm:$0xff]
        %v248 = vld [vmem:[%s200 + $0x30] sm:$0xff]
        %v249 = vld [vmem:[%s200 + $0x38] sm:$0xff]
        %v250 = vld [vmem:[%s200 + $0x40] sm:$0xff]
        %v251 = vld [vmem:[%s200 + $0x48] sm:$0xff]
        %v252 = vld [vmem:[%s200 + $0x50] sm:$0xff]
        %v253 = vld [vmem:[%s200 + $0x58] sm:$0xff]
        %v254 = vld [vmem:[%s200 + $0x60] sm:$0xff]
        %v255 = vld [vmem:[%s200 + $0x68] sm:$0xff]
        %v256 = vld [vmem:[%s200 + $0x70] sm:$0xff]
        %v257 = vld [vmem:[%s200 + $0x78] sm:$0xff]
        %v258 = vld [vmem:[%s200 + $0x80] sm:$0xff]
        %v259 = vld [vmem:[%s200 + $0x88] sm:$0xff]
        %v260 = vld [vmem:[%s200 + $0x90] sm:$0xff]
        %v261 = vld [vmem:[%s200 + $0x98] sm:$0xff]
        %v262 = vld [vmem:[%s200 + $0xa0] sm:$0xff]
        %v263 = vld [vmem:[%s200 + $0xa8] sm:$0xff]
        %v264 = vld [vmem:[%s200 + $0xb0] sm:$0xff]
        %v265 = vld [vmem:[%s200 + $0xb8] sm:$0xff]
        %v266 = vld [vmem:[%s200 + $0xc0] sm:$0xff]
        %v267 = vld [vmem:[%s200 + $0xc8] sm:$0xff]
        %v268 = vld [vmem:[%s200 + $0xd0] sm:$0xff]
        %v269 = vld [vmem:[%s200 + $0xd8] sm:$0xff]
        %v270 = vld [vmem:[%s200 + $0xe0] sm:$0xff]
        %v271 = vld [vmem:[%s200 + $0xe8] sm:$0xff]
        %v272 = vld [vmem:[%s200 + $0xf0] sm:$0xff]
        %v273 = vld [vmem:[%s200 + $0xf8] sm:$0xff]
        %v274 = vld [vmem:[%s200 + $0x100] sm:$0xff]
        %v275 = vld [vmem:[%s200 + $0x108] sm:$0xff]
        %v276 = vld [vmem:[%s200 + $0x110] sm:$0xff]
        %v277 = vld [vmem:[%s200 + $0x118] sm:$0xff]
        %v278 = vld [vmem:[%s200 + $0x120] sm:$0xff]
        %v279 = vld [vmem:[%s200 + $0x128] sm:$0xff]
        %v280 = vld [vmem:[%s200 + $0x130] sm:$0xff]
        %v281 = vld [vmem:[%s200 + $0x138] sm:$0xff]
        %v282 = vld [vmem:[%s200 + $0x140] sm:$0xff]
        %v283 = vld [vmem:[%s200 + $0x148] sm:$0xff]
        %v284 = vld [vmem:[%s200 + $0x150] sm:$0xff]
        %v285 = vld [vmem:[%s200 + $0x158] sm:$0xff]
        %v286 = vld [vmem:[%s200 + $0x160] sm:$0xff]
        %v287 = vld [vmem:[%s200 + $0x168] sm:$0xff]
        %v288 = vld [vmem:[%s200 + $0x170] sm:$0xff]
        %v289 = vld [vmem:[%s200 + $0x178] sm:$0xff]
        %v290 = vld [vmem:[%s200 + $0x180] sm:$0xff]
        %v291 = vld [vmem:[%s200 + $0x188] sm:$0xff]
        %v292 = vld [vmem:[%s200 + $0x190] sm:$0xff]
        %v293 = vld [vmem:[%s200 + $0x198] sm:$0xff]
        %v294 = vld [vmem:[%s200 + $0x1a0] sm:$0xff]
        %v295 = vld [vmem:[%s200 + $0x1a8] sm:$0xff]
        %v296 = vld [vmem:[%s200 + $0x1b0] sm:$0xff]
        %v297 = vld [vmem:[%s200 + $0x1b8] sm:$0xff]
        %v298 = vld [vmem:[%s200 + $0x1c0] sm:$0xff]
        %v299 = vld [vmem:[%s200 + $0x1c8] sm:$0xff]
        %v300 = vld [vmem:[%s200 + $0x1d0] sm:$0xff]
        %v301 = vld [vmem:[%s200 + $0x1d8] sm:$0xff]
        %v302 = vld [vmem:[%s200 + $0x1e0] sm:$0xff]
        %v303 = vld [vmem:[%s200 + $0x1e8] sm:$0xff]
        %v304 = vld [vmem:[%s200 + $0x1f0] sm:$0xff]
        %v305 = vld [vmem:[%s200 + $0x1f8] sm:$0xff]
        %v306 = vld [vmem:[%s200 + $0x200] sm:$0xff]
        %v307 = vld [vmem:[%s200 + $0x208] sm:$0xff]
        %v308 = vld [vmem:[%s200 + $0x210] sm:$0xff]
        %v309 = vld [vmem:[%s200 + $0x218] sm:$0xff]
        %v310 = vld [vmem:[%s200 + $0x220] sm:$0xff]
        %v311 = vld [vmem:[%s200 + $0x228] sm:$0xff]
        %v312 = vld [vmem:[%s200 + $0x230] sm:$0xff]
        %v313 = vld [vmem:[%s200 + $0x238] sm:$0xff]
        %v314 = vld [vmem:[%s200 + $0x240] sm:$0xff]
        %v315 = vld [vmem:[%s200 + $0x248] sm:$0xff]
        %v316 = vld [vmem:[%s200 + $0x250] sm:$0xff]
        %v317 = vld [vmem:[%s200 + $0x258] sm:$0xff]
        %v318 = vld [vmem:[%s200 + $0x260] sm:$0xff]
        %v319 = vld [vmem:[%s200 + $0x268] sm:$0xff]
        %v320 = vld [vmem:[%s200 + $0x270] sm:$0xff]
        %v321 = vld [vmem:[%s200 + $0x278] sm:$0xff]
        %v322 = vld [vmem:[%s200 + $0x280] sm:$0xff]
        %v323 = vld [vmem:[%s200 + $0x288] sm:$0xff]
        %v324 = vld [vmem:[%s200 + $0x290] sm:$0xff]
        %v325 = vld [vmem:[%s200 + $0x298] sm:$0xff]
        %v326 = vld [vmem:[%s200 + $0x2a0] sm:$0xff]
        %v327 = vld [vmem:[%s200 + $0x2a8] sm:$0xff]
        %v328 = vld [vmem:[%s200 + $0x2b0] sm:$0xff]
        %v329 = vld [vmem:[%s200 + $0x2b8] sm:$0xff]
        %v330 = vld [vmem:[%s200 + $0x2c0] sm:$0xff]
        %v331 = vld [vmem:[%s200 + $0x2c8] sm:$0xff]
        %v332 = vld [vmem:[%s200 + $0x2d0] sm:$0xff]
        %v333 = vld [vmem:[%s200 + $0x2d8] sm:$0xff]
        %v334 = vld [vmem:[%s200 + $0x2e0] sm:$0xff]
        %v335 = vld [vmem:[%s200 + $0x2e8] sm:$0xff]
        %v336 = vld [vmem:[%s200 + $0x2f0] sm:$0xff]
        %v337 = vld [vmem:[%s200 + $0x2f8] sm:$0xff]
        %v338 = vld [vmem:[%s200 + $0x300] sm:$0xff]
        %v339 = vld [vmem:[%s200 + $0x308] sm:$0xff]
        %v340 = vld [vmem:[%s200 + $0x310] sm:$0xff]
        %v341 = vld [vmem:[%s200 + $0x318] sm:$0xff]
        %v342 = vld [vmem:[%s200 + $0x320] sm:$0xff]
        %v343 = vld [vmem:[%s200 + $0x328] sm:$0xff]
        %v344 = vld [vmem:[%s200 + $0x330] sm:$0xff]
        %v345 = vld [vmem:[%s200 + $0x338] sm:$0xff]
        %v346 = vld [vmem:[%s200 + $0x340] sm:$0xff]
        %v347 = vld [vmem:[%s200 + $0x348] sm:$0xff]
        %v348 = vld [vmem:[%s200 + $0x350] sm:$0xff]
        %v349 = vld [vmem:[%s200 + $0x358] sm:$0xff]
        %v350 = vld [vmem:[%s200 + $0x360] sm:$0xff]
        %v351 = vld [vmem:[%s200 + $0x368] sm:$0xff]
        %v352 = vld [vmem:[%s200 + $0x370] sm:$0xff]
        %v353 = vld [vmem:[%s200 + $0x378] sm:$0xff]
        %v354 = vld [vmem:[%s200 + $0x380] sm:$0xff]
        %v355 = vld [vmem:[%s200 + $0x388] sm:$0xff]
        %v356 = vld [vmem:[%s200 + $0x390] sm:$0xff]
        %v357 = vld [vmem:[%s200 + $0x398] sm:$0xff]
        %v358 = vld [vmem:[%s200 + $0x3a0] sm:$0xff]
        %v359 = vld [vmem:[%s200 + $0x3a8] sm:$0xff]
        %v360 = vld [vmem:[%s200 + $0x3b0] sm:$0xff]
        %v361 = vld [vmem:[%s200 + $0x3b8] sm:$0xff]
        %v362 = vld [vmem:[%s200 + $0x3c0] sm:$0xff]
        %v363 = vld [vmem:[%s200 + $0x3c8] sm:$0xff]
        %v364 = vld [vmem:[%s200 + $0x3d0] sm:$0xff]
        %v365 = vld [vmem:[%s200 + $0x3d8] sm:$0xff]
        %v366 = vld [vmem:[%s200 + $0x3e0] sm:$0xff]
        %v367 = vld [vmem:[%s200 + $0x3e8] sm:$0xff]
        %v368 = vld [vmem:[%s200 + $0x3f0] sm:$0xff]
        %v369 = vld [vmem:[%s200 + $0x3f8] sm:$0xff]
        %v370 = vld [vmem:[%s200 + $0x400] sm:$0xff]
        %v371 = vld [vmem:[%s200 + $0x408] sm:$0xff]
        %v372 = vld [vmem:[%s200 + $0x410] sm:$0xff]
        %v373 = vld [vmem:[%s200 + $0x418] sm:$0xff]
        %v374 = vld [vmem:[%s200 + $0x420] sm:$0xff]
        %v375 = vld [vmem:[%s200 + $0x428] sm:$0xff]
        %v376 = vld [vmem:[%s200 + $0x430] sm:$0xff]
        %v377 = vld [vmem:[%s200 + $0x438] sm:$0xff]
        %v378 = vld [vmem:[%s200 + $0x440] sm:$0xff]
        %v379 = vld [vmem:[%s200 + $0x448] sm:$0xff]
        %v380 = vld [vmem:[%s200 + $0x450] sm:$0xff]
        %v381 = vld [vmem:[%s200 + $0x458] sm:$0xff]
        %v382 = vld [vmem:[%s200 + $0x460] sm:$0xff]
        %v383 = vld [vmem:[%s200 + $0x468] sm:$0xff]
        %v384 = vld [vmem:[%s200 + $0x470] sm:$0xff]
        %v385 = vld [vmem:[%s200 + $0x478] sm:$0xff]
        %v386 = vld [vmem:[%s200 + $0x480] sm:$0xff]
        %v387 = vld [vmem:[%s200 + $0x488] sm:$0xff]
        %v388 = vld [vmem:[%s200 + $0x490] sm:$0xff]
        %v389 = vld [vmem:[%s200 + $0x498] sm:$0xff]
        %v390 = vld [vmem:[%s200 + $0x4a0] sm:$0xff]
        %v391 = vld [vmem:[%s200 + $0x4a8] sm:$0xff]
        %v392 = vld [vmem:[%s200 + $0x4b0] sm:$0xff]
        %v393 = vld [vmem:[%s200 + $0x4b8] sm:$0xff]
        %v394 = vld [vmem:[%s200 + $0x4c0] sm:$0xff]
        %v395 = vld [vmem:[%s200 + $0x4c8] sm:$0xff]
        %v396 = vld [vmem:[%s200 + $0x4d0] sm:$0xff]
        %v397 = vld [vmem:[%s200 + $0x4d8] sm:$0xff]
        %v398 = vld [vmem:[%s200 + $0x4e0] sm:$0xff]
        %v399 = vld [vmem:[%s200 + $0x4e8] sm:$0xff]
        %v400 = vld [vmem:[%s200 + $0x4f0] sm:$0xff]
        %v401 = vld [vmem:[%s200 + $0x4f8] sm:$0xff]
        %v402 = vld [vmem:[%s200 + $0x500] sm:$0xff]
        %v403 = vld [vmem:[%s200 + $0x508] sm:$0xff]
        %v404 = vld [vmem:[%s200 + $0x510] sm:$0xff]
        %v405 = vld [vmem:[%s200 + $0x518] sm:$0xff]
        %v406 = vld [vmem:[%s200 + $0x520] sm:$0xff]
        %v407 = vld [vmem:[%s200 + $0x528] sm:$0xff]
        %v408 = vld [vmem:[%s200 + $0x530] sm:$0xff]
        %v409 = vld [vmem:[%s200 + $0x538] sm:$0xff]
        %v410 = vld [vmem:[%s200 + $0x540] sm:$0xff]
        %v411 = vld [vmem:[%s200 + $0x548] sm:$0xff]
        %v412 = vld [vmem:[%s200 + $0x550] sm:$0xff]
        %v413 = vld [vmem:[%s200 + $0x558] sm:$0xff]
        %v414 = vld [vmem:[%s200 + $0x560] sm:$0xff]
        %v415 = vld [vmem:[%s200 + $0x568] sm:$0xff]
        %v416 = vld [vmem:[%s200 + $0x570] sm:$0xff]
        %v417 = vld [vmem:[%s200 + $0x578] sm:$0xff]
        %v418 = vld [vmem:[%s200 + $0x580] sm:$0xff]
        %v419 = vld [vmem:[%s200 + $0x588] sm:$0xff]
        %v420 = vld [vmem:[%s200 + $0x590] sm:$0xff]
        %v421 = vld [vmem:[%s200 + $0x598] sm:$0xff]
        %v422 = vld [vmem:[%s200 + $0x5a0] sm:$0xff]
        %v423 = vld [vmem:[%s200 + $0x5a8] sm:$0xff]
        %v424 = vld [vmem:[%s200 + $0x5b0] sm:$0xff]
        %v425 = vld [vmem:[%s200 + $0x5b8] sm:$0xff]
        %v426 = vld [vmem:[%s200 + $0x5c0] sm:$0xff]
        %v427 = vld [vmem:[%s200 + $0x5c8] sm:$0xff]
        %v428 = vld [vmem:[%s200 + $0x5d0] sm:$0xff]
        %v429 = vld [vmem:[%s200 + $0x5d8] sm:$0xff]
        %v430 = vld [vmem:[%s200 + $0x5e0] sm:$0xff]
        %v431 = vld [vmem:[%s200 + $0x5e8] sm:$0xff]
        %v432 = vld [vmem:[%s200 + $0x5f0] sm:$0xff]
        %v433 = vld [vmem:[%s200 + $0x5f8] sm:$0xff]
        %v434 = vld [vmem:[%s200 + $0x600] sm:$0xff]
        %v435 = vld [vmem:[%s200 + $0x608] sm:$0xff]
        %v436 = vld [vmem:[%s200 + $0x610] sm:$0xff]
        %v437 = vld [vmem:[%s200 + $0x618] sm:$0xff]
        %v438 = vld [vmem:[%s200 + $0x620] sm:$0xff]
        %v439 = vld [vmem:[%s200 + $0x628] sm:$0xff]
        %v440 = vld [vmem:[%s200 + $0x630] sm:$0xff]
        %v441 = vld [vmem:[%s200 + $0x638] sm:$0xff]
        %v442 = vld [vmem:[%s200 + $0x640] sm:$0xff]
        %v443 = vld [vmem:[%s200 + $0x648] sm:$0xff]
        %v444 = vld [vmem:[%s200 + $0x650] sm:$0xff]
        %v445 = vld [vmem:[%s200 + $0x658] sm:$0xff]
        %v446 = vld [vmem:[%s200 + $0x660] sm:$0xff]
        %v447 = vld [vmem:[%s200 + $0x668] sm:$0xff]
        %v448 = vld [vmem:[%s200 + $0x670] sm:$0xff]
        %v449 = vld [vmem:[%s200 + $0x678] sm:$0xff]
        %v450 = vld [vmem:[%s200 + $0x680] sm:$0xff]
        %v451 = vld [vmem:[%s200 + $0x688] sm:$0xff]
        %v452 = vld [vmem:[%s200 + $0x690] sm:$0xff]
        %v453 = vld [vmem:[%s200 + $0x698] sm:$0xff]
        %v454 = vld [vmem:[%s200 + $0x6a0] sm:$0xff]
        %v455 = vld [vmem:[%s200 + $0x6a8] sm:$0xff]
        %v456 = vld [vmem:[%s200 + $0x6b0] sm:$0xff]
        %v457 = vld [vmem:[%s200 + $0x6b8] sm:$0xff]
        %v458 = vld [vmem:[%s200 + $0x6c0] sm:$0xff]
        %v459 = vld [vmem:[%s200 + $0x6c8] sm:$0xff]
        %v460 = vld [vmem:[%s200 + $0x6d0] sm:$0xff]
        %v461 = vld [vmem:[%s200 + $0x6d8] sm:$0xff]
        %v462 = vld [vmem:[%s200 + $0x6e0] sm:$0xff]
        %v463 = vld [vmem:[%s200 + $0x6e8] sm:$0xff]
        %v464 = vld [vmem:[%s200 + $0x6f0] sm:$0xff]
        %v465 = vld [vmem:[%s200 + $0x6f8] sm:$0xff]
        %v466 = vld [vmem:[%s200 + $0x700] sm:$0xff]
        %v467 = vld [vmem:[%s200 + $0x708] sm:$0xff]
        %v468 = vld [vmem:[%s200 + $0x710] sm:$0xff]
        %v469 = vld [vmem:[%s200 + $0x718] sm:$0xff]
        %v470 = vld [vmem:[%s200 + $0x720] sm:$0xff]
        %v471 = vld [vmem:[%s200 + $0x728] sm:$0xff]
        %v472 = vld [vmem:[%s200 + $0x730] sm:$0xff]
        %v473 = vld [vmem:[%s200 + $0x738] sm:$0xff]
        %v474 = vld [vmem:[%s200 + $0x740] sm:$0xff]
        %v475 = vld [vmem:[%s200 + $0x748] sm:$0xff]
        %v476 = vld [vmem:[%s200 + $0x750] sm:$0xff]
        %v477 = vld [vmem:[%s200 + $0x758] sm:$0xff]
        %v478 = vld [vmem:[%s200 + $0x760] sm:$0xff]
        %v479 = vld [vmem:[%s200 + $0x768] sm:$0xff]
        %v480 = vld [vmem:[%s200 + $0x770] sm:$0xff]
        %v481 = vld [vmem:[%s200 + $0x778] sm:$0xff]
        %v482 = vld [vmem:[%s200 + $0x780] sm:$0xff]
        %v483 = vld [vmem:[%s200 + $0x788] sm:$0xff]
        %v484 = vld [vmem:[%s200 + $0x790] sm:$0xff]
        %v485 = vld [vmem:[%s200 + $0x798] sm:$0xff]
        %v486 = vld [vmem:[%s200 + $0x7a0] sm:$0xff]
        %v487 = vld [vmem:[%s200 + $0x7a8] sm:$0xff]
        %v488 = vld [vmem:[%s200 + $0x7b0] sm:$0xff]
        %v489 = vld [vmem:[%s200 + $0x7b8] sm:$0xff]
        %v490 = vld [vmem:[%s200 + $0x7c0] sm:$0xff]
        %v491 = vld [vmem:[%s200 + $0x7c8] sm:$0xff]
        %v492 = vld [vmem:[%s200 + $0x7d0] sm:$0xff]
        %v493 = vld [vmem:[%s200 + $0x7d8] sm:$0xff]
        %v494 = vld [vmem:[%s200 + $0x7e0] sm:$0xff]
        %v495 = vld [vmem:[%s200 + $0x7e8] sm:$0xff]
        %v496 = vld [vmem:[%s200 + $0x7f0] sm:$0xff]
        %v497 = vld [vmem:[%s200 + $0x7f8] sm:$0xff]
        %v498 = vld [vmem:[%s200 + $0x800] sm:$0xff]
        %v499 = vld [vmem:[%s200 + $0x808] sm:$0xff]
        %v500 = vld [vmem:[%s200 + $0x810] sm:$0xff]
        %v501 = vld [vmem:[%s200 + $0x818] sm:$0xff]
        %v502 = vld [vmem:[%s200 + $0x820] sm:$0xff]
        %v503 = vld [vmem:[%s200 + $0x828] sm:$0xff]
        %v504 = vld [vmem:[%s200 + $0x830] sm:$0xff]
        %v505 = vld [vmem:[%s200 + $0x838] sm:$0xff]
        %v506 = vld [vmem:[%s200 + $0x840] sm:$0xff]
        %v507 = vld [vmem:[%s200 + $0x848] sm:$0xff]
        %v508 = vld [vmem:[%s200 + $0x850] sm:$0xff]
        %v509 = vld [vmem:[%s200 + $0x858] sm:$0xff]
        %v510 = vld [vmem:[%s200 + $0x860] sm:$0xff]
        %v511 = vld [vmem:[%s200 + $0x868] sm:$0xff]
        %v512 = vld [vmem:[%s200 + $0x870] sm:$0xff]
        %v513 = vld [vmem:[%s200 + $0x878] sm:$0xff]
        %v514 = vld [vmem:[%s200 + $0x880] sm:$0xff]
        %v515 = vld [vmem:[%s200 + $0x888] sm:$0xff]
        %v516 = vld [vmem:[%s200 + $0x890] sm:$0xff]
        %v517 = vld [vmem:[%s200 + $0x898] sm:$0xff]
        %v518 = vld [vmem:[%s200 + $0x8a0] sm:$0xff]
        %v519 = vld [vmem:[%s200 + $0x8a8] sm:$0xff]
        %v520 = vld [vmem:[%s200 + $0x8b0] sm:$0xff]
        %v521 = vld [vmem:[%s200 + $0x8b8] sm:$0xff]
        %v522 = vld [vmem:[%s200 + $0x8c0] sm:$0xff]
        %v523 = vld [vmem:[%s200 + $0x8c8] sm:$0xff]
        %v524 = vld [vmem:[%s200 + $0x8d0] sm:$0xff]
        %v525 = vld [vmem:[%s200 + $0x8d8] sm:$0xff]
        %v526 = vld [vmem:[%s200 + $0x8e0] sm:$0xff]
        %v527 = vld [vmem:[%s200 + $0x8e8] sm:$0xff]
        %v528 = vld [vmem:[%s200 + $0x8f0] sm:$0xff]
        %v529 = vld [vmem:[%s200 + $0x8f8] sm:$0xff]
        %v530 = vld [vmem:[%s200 + $0x900] sm:$0xff]
        %v531 = vld [vmem:[%s200 + $0x908] sm:$0xff]
        %v532 = vld [vmem:[%s200 + $0x910] sm:$0xff]
        %v533 = vld [vmem:[%s200 + $0x918] sm:$0xff]
        %v534 = vld [vmem:[%s200 + $0x920] sm:$0xff]
        %v535 = vld [vmem:[%s200 + $0x928] sm:$0xff]
        %v536 = vld [vmem:[%s200 + $0x930] sm:$0xff]
        %v537 = vld [vmem:[%s200 + $0x938] sm:$0xff]
        %v538 = vld [vmem:[%s200 + $0x940] sm:$0xff]
        %v539 = vld [vmem:[%s200 + $0x948] sm:$0xff]
        %v540 = vld [vmem:[%s200 + $0x950] sm:$0xff]
        %v541 = vld [vmem:[%s200 + $0x958] sm:$0xff]
        %v542 = vld [vmem:[%s200 + $0x960] sm:$0xff]
        %v543 = vld [vmem:[%s200 + $0x968] sm:$0xff]
        %v544 = vld [vmem:[%s200 + $0x970] sm:$0xff]
        %v545 = vld [vmem:[%s200 + $0x978] sm:$0xff]
        %v546 = vld [vmem:[%s200 + $0x980] sm:$0xff]
        %v547 = vld [vmem:[%s200 + $0x988] sm:$0xff]
        %v548 = vld [vmem:[%s200 + $0x990] sm:$0xff]
        %v549 = vld [vmem:[%s200 + $0x998] sm:$0xff]
        %v550 = vld [vmem:[%s200 + $0x9a0] sm:$0xff]
        %v551 = vld [vmem:[%s200 + $0x9a8] sm:$0xff]
        %v552 = vld [vmem:[%s200 + $0x9b0] sm:$0xff]
        %v553 = vld [vmem:[%s200 + $0x9b8] sm:$0xff]
        %v554 = vld [vmem:[%s200 + $0x9c0] sm:$0xff]
        %v555 = vld [vmem:[%s200 + $0x9c8] sm:$0xff]
        %v556 = vld [vmem:[%s200 + $0x9d0] sm:$0xff]
        %v557 = vld [vmem:[%s200 + $0x9d8] sm:$0xff]
        %v558 = vld [vmem:[%s200 + $0x9e0] sm:$0xff]
        %v559 = vld [vmem:[%s200 + $0x9e8] sm:$0xff]
        %v560 = vld [vmem:[%s200 + $0x9f0] sm:$0xff]
        %v561 = vld [vmem:[%s200 + $0x9f8] sm:$0xff]
        %v562 = vld [vmem:[%s200 + $0xa00] sm:$0xff]
        %v563 = vld [vmem:[%s200 + $0xa08] sm:$0xff]
        %v564 = vld [vmem:[%s200 + $0xa10] sm:$0xff]
        %v565 = vld [vmem:[%s200 + $0xa18] sm:$0xff]
        %v566 = vld [vmem:[%s200 + $0xa20] sm:$0xff]
        %v567 = vld [vmem:[%s200 + $0xa28] sm:$0xff]
        %v568 = vld [vmem:[%s200 + $0xa30] sm:$0xff]
        %v569 = vld [vmem:[%s200 + $0xa38] sm:$0xff]
        %v570 = vld [vmem:[%s200 + $0xa40] sm:$0xff]
        %v571 = vld [vmem:[%s200 + $0xa48] sm:$0xff]
        %v572 = vld [vmem:[%s200 + $0xa50] sm:$0xff]
        %v573 = vld [vmem:[%s200 + $0xa58] sm:$0xff]
        %v574 = vld [vmem:[%s200 + $0xa60] sm:$0xff]
        %v575 = vld [vmem:[%s200 + $0xa68] sm:$0xff]
        %v576 = vld [vmem:[%s200 + $0xa70] sm:$0xff]
        %v577 = vld [vmem:[%s200 + $0xa78] sm:$0xff]
        %v578 = vld [vmem:[%s200 + $0xa80] sm:$0xff]
        %v579 = vld [vmem:[%s200 + $0xa88] sm:$0xff]
        %v580 = vld [vmem:[%s200 + $0xa90] sm:$0xff]
        %v581 = vld [vmem:[%s200 + $0xa98] sm:$0xff]
        %v582 = vld [vmem:[%s200 + $0xaa0] sm:$0xff]
        %v583 = vld [vmem:[%s200 + $0xaa8] sm:$0xff]
        %v584 = vld [vmem:[%s200 + $0xab0] sm:$0xff]
        %v585 = vld [vmem:[%s200 + $0xab8] sm:$0xff]
        %v586 = vld [vmem:[%s200 + $0xac0] sm:$0xff]
        %v587 = vld [vmem:[%s200 + $0xac8] sm:$0xff]
        %v588 = vld [vmem:[%s200 + $0xad0] sm:$0xff]
        %v589 = vld [vmem:[%s200 + $0xad8] sm:$0xff]
        %v590 = vld [vmem:[%s200 + $0xae0] sm:$0xff]
        %v591 = vld [vmem:[%s200 + $0xae8] sm:$0xff]
        %v592 = vld [vmem:[%s200 + $0xaf0] sm:$0xff]
        %v593 = vld [vmem:[%s200 + $0xaf8] sm:$0xff]
        %v594 = vld [vmem:[%s200 + $0xb00] sm:$0xff]
        %v595 = vld [vmem:[%s200 + $0xb08] sm:$0xff]
        %v596 = vld [vmem:[%s200 + $0xb10] sm:$0xff]
        %v597 = vld [vmem:[%s200 + $0xb18] sm:$0xff]
        %v598 = vld [vmem:[%s200 + $0xb20] sm:$0xff]
        %v599 = vld [vmem:[%s200 + $0xb28] sm:$0xff]
        %v600 = vld [vmem:[%s200 + $0xb30] sm:$0xff]
        %v601 = vld [vmem:[%s200 + $0xb38] sm:$0xff]
        %v602 = vld [vmem:[%s200 + $0xb40] sm:$0xff]
        %v603 = vld [vmem:[%s200 + $0xb48] sm:$0xff]
        %v604 = vld [vmem:[%s200 + $0xb50] sm:$0xff]
        %v605 = vld [vmem:[%s200 + $0xb58] sm:$0xff]
        %v606 = vld [vmem:[%s200 + $0xb60] sm:$0xff]
        %v607 = vld [vmem:[%s200 + $0xb68] sm:$0xff]
        %v608 = vld [vmem:[%s200 + $0xb70] sm:$0xff]
        %v609 = vld [vmem:[%s200 + $0xb78] sm:$0xff]
        %v610 = vld [vmem:[%s200 + $0xb80] sm:$0xff]
        %v611 = vld [vmem:[%s200 + $0xb88] sm:$0xff]
        %v612 = vld [vmem:[%s200 + $0xb90] sm:$0xff]
        %v613 = vld [vmem:[%s200 + $0xb98] sm:$0xff]
        %v614 = vld [vmem:[%s200 + $0xba0] sm:$0xff]
        %v615 = vld [vmem:[%s200 + $0xba8] sm:$0xff]
        %v616 = vld [vmem:[%s200 + $0xbb0] sm:$0xff]
        %v617 = vld [vmem:[%s200 + $0xbb8] sm:$0xff]
        %v618 = vld [vmem:[%s200 + $0xbc0] sm:$0xff]
        %v619 = vld [vmem:[%s200 + $0xbc8] sm:$0xff]
        %v620 = vld [vmem:[%s200 + $0xbd0] sm:$0xff]
        %v621 = vld [vmem:[%s200 + $0xbd8] sm:$0xff]
        %v622 = vld [vmem:[%s200 + $0xbe0] sm:$0xff]
        %v623 = vld [vmem:[%s200 + $0xbe8] sm:$0xff]
        %v624 = vld [vmem:[%s200 + $0xbf0] sm:$0xff]
        %v625 = vld [vmem:[%s200 + $0xbf8] sm:$0xff]
        %v626 = vld [vmem:[%s200 + $0xc00] sm:$0xff]
        %v627 = vld [vmem:[%s200 + $0xc08] sm:$0xff]
        %v628 = vld [vmem:[%s200 + $0xc10] sm:$0xff]
        %v629 = vld [vmem:[%s200 + $0xc18] sm:$0xff]
        %v630 = vld [vmem:[%s200 + $0xc20] sm:$0xff]
        %v631 = vld [vmem:[%s200 + $0xc28] sm:$0xff]
        %v632 = vld [vmem:[%s200 + $0xc30] sm:$0xff]
        %v633 = vld [vmem:[%s200 + $0xc38] sm:$0xff]
        %v634 = vld [vmem:[%s200 + $0xc40] sm:$0xff]
        %v635 = vld [vmem:[%s200 + $0xc48] sm:$0xff]
        %v636 = vld [vmem:[%s200 + $0xc50] sm:$0xff]
        %v637 = vld [vmem:[%s200 + $0xc58] sm:$0xff]
        %v638 = vld [vmem:[%s200 + $0xc60] sm:$0xff]
        %v639 = vld [vmem:[%s200 + $0xc68] sm:$0xff]
        %v640 = vld [vmem:[%s200 + $0xc70] sm:$0xff]
        %v641 = vld [vmem:[%s200 + $0xc78] sm:$0xff]
        %v642 = vld [vmem:[%s200 + $0xc80] sm:$0xff]
        %v643 = vld [vmem:[%s200 + $0xc88] sm:$0xff]
        %v644 = vld [vmem:[%s200 + $0xc90] sm:$0xff]
        %v645 = vld [vmem:[%s200 + $0xc98] sm:$0xff]
        %v646 = vld [vmem:[%s200 + $0xca0] sm:$0xff]
        %v647 = vld [vmem:[%s200 + $0xca8] sm:$0xff]
        %v648 = vld [vmem:[%s200 + $0xcb0] sm:$0xff]
        %v649 = vld [vmem:[%s200 + $0xcb8] sm:$0xff]
        %v650 = vld [vmem:[%s200 + $0xcc0] sm:$0xff]
        %v651 = vld [vmem:[%s200 + $0xcc8] sm:$0xff]
        %v652 = vld [vmem:[%s200 + $0xcd0] sm:$0xff]
        %v653 = vld [vmem:[%s200 + $0xcd8] sm:$0xff]
        %v654 = vld [vmem:[%s200 + $0xce0] sm:$0xff]
        %v655 = vld [vmem:[%s200 + $0xce8] sm:$0xff]
        %v656 = vld [vmem:[%s200 + $0xcf0] sm:$0xff]
        %v657 = vld [vmem:[%s200 + $0xcf8] sm:$0xff]
        %v658 = vld [vmem:[%s200 + $0xd00] sm:$0xff]
        %v659 = vld [vmem:[%s200 + $0xd08] sm:$0xff]
        %v660 = vld [vmem:[%s200 + $0xd10] sm:$0xff]
        %v661 = vld [vmem:[%s200 + $0xd18] sm:$0xff]
        %v662 = vld [vmem:[%s200 + $0xd20] sm:$0xff]
        %v663 = vld [vmem:[%s200 + $0xd28] sm:$0xff]
        %v664 = vld [vmem:[%s200 + $0xd30] sm:$0xff]
        %v665 = vld [vmem:[%s200 + $0xd38] sm:$0xff]
        %v666 = vld [vmem:[%s200 + $0xd40] sm:$0xff]
        %v667 = vld [vmem:[%s200 + $0xd48] sm:$0xff]
        %v668 = vld [vmem:[%s200 + $0xd50] sm:$0xff]
        %v669 = vld [vmem:[%s200 + $0xd58] sm:$0xff]
        %v670 = vld [vmem:[%s200 + $0xd60] sm:$0xff]
        %v671 = vld [vmem:[%s200 + $0xd68] sm:$0xff]
        %v672 = vld [vmem:[%s200 + $0xd70] sm:$0xff]
        %v673 = vld [vmem:[%s200 + $0xd78] sm:$0xff]
        %v674 = vld [vmem:[%s200 + $0xd80] sm:$0xff]
        %v675 = vld [vmem:[%s200 + $0xd88] sm:$0xff]
        %v676 = vld [vmem:[%s200 + $0xd90] sm:$0xff]
        %v677 = vld [vmem:[%s200 + $0xd98] sm:$0xff]
        %v678 = vld [vmem:[%s200 + $0xda0] sm:$0xff]
        %v679 = vld [vmem:[%s200 + $0xda8] sm:$0xff]
        %v680 = vld [vmem:[%s200 + $0xdb0] sm:$0xff]
        %v681 = vld [vmem:[%s200 + $0xdb8] sm:$0xff]
        %v682 = vld [vmem:[%s200 + $0xdc0] sm:$0xff]
        %v683 = vld [vmem:[%s200 + $0xdc8] sm:$0xff]
        %v684 = vld [vmem:[%s200 + $0xdd0] sm:$0xff]
        %v685 = vld [vmem:[%s200 + $0xdd8] sm:$0xff]
        %v686 = vld [vmem:[%s200 + $0xde0] sm:$0xff]
        %v687 = vld [vmem:[%s200 + $0xde8] sm:$0xff]
        %v688 = vld [vmem:[%s200 + $0xdf0] sm:$0xff]
        %v689 = vld [vmem:[%s200 + $0xdf8] sm:$0xff]
        %v690 = vld [vmem:[%s200 + $0xe00] sm:$0xff]
        %v691 = vld [vmem:[%s200 + $0xe08] sm:$0xff]
        %v692 = vld [vmem:[%s200 + $0xe10] sm:$0xff]
        %v693 = vld [vmem:[%s200 + $0xe18] sm:$0xff]
        %v694 = vld [vmem:[%s200 + $0xe20] sm:$0xff]
        %v695 = vld [vmem:[%s200 + $0xe28] sm:$0xff]
        %v696 = vld [vmem:[%s200 + $0xe30] sm:$0xff]
        %v697 = vld [vmem:[%s200 + $0xe38] sm:$0xff]
        %v698 = vld [vmem:[%s200 + $0xe40] sm:$0xff]
        %v699 = vld [vmem:[%s200 + $0xe48] sm:$0xff]
        %v700 = vld [vmem:[%s200 + $0xe50] sm:$0xff]
        %v701 = vld [vmem:[%s200 + $0xe58] sm:$0xff]
        %v702 = vld [vmem:[%s200 + $0xe60] sm:$0xff]
        %v703 = vld [vmem:[%s200 + $0xe68] sm:$0xff]
        %v704 = vld [vmem:[%s200 + $0xe70] sm:$0xff]
        %v705 = vld [vmem:[%s200 + $0xe78] sm:$0xff]
        %v706 = vld [vmem:[%s200 + $0xe80] sm:$0xff]
        %v707 = vld [vmem:[%s200 + $0xe88] sm:$0xff]
        %v708 = vld [vmem:[%s200 + $0xe90] sm:$0xff]
        %v709 = vld [vmem:[%s200 + $0xe98] sm:$0xff]
        %v710 = vld [vmem:[%s200 + $0xea0] sm:$0xff]
        %v711 = vld [vmem:[%s200 + $0xea8] sm:$0xff]
        %v712 = vld [vmem:[%s200 + $0xeb0] sm:$0xff]
        %v713 = vld [vmem:[%s200 + $0xeb8] sm:$0xff]
        %v714 = vld [vmem:[%s200 + $0xec0] sm:$0xff]
        %v715 = vld [vmem:[%s200 + $0xec8] sm:$0xff]
        %v716 = vld [vmem:[%s200 + $0xed0] sm:$0xff]
        %v717 = vld [vmem:[%s200 + $0xed8] sm:$0xff]
        %v718 = vld [vmem:[%s200 + $0xee0] sm:$0xff]
        %v719 = vld [vmem:[%s200 + $0xee8] sm:$0xff]
        %v720 = vld [vmem:[%s200 + $0xef0] sm:$0xff]
        %v721 = vld [vmem:[%s200 + $0xef8] sm:$0xff]
        %v722 = vld [vmem:[%s200 + $0xf00] sm:$0xff]
        %v723 = vld [vmem:[%s200 + $0xf08] sm:$0xff]
        %v724 = vld [vmem:[%s200 + $0xf10] sm:$0xff]
        %v725 = vld [vmem:[%s200 + $0xf18] sm:$0xff]
        %v726 = vld [vmem:[%s200 + $0xf20] sm:$0xff]
        %v727 = vld [vmem:[%s200 + $0xf28] sm:$0xff]
        %v728 = vld [vmem:[%s200 + $0xf30] sm:$0xff]
        %v729 = vld [vmem:[%s200 + $0xf38] sm:$0xff]
        %v730 = vld [vmem:[%s200 + $0xf40] sm:$0xff]
        %v731 = vld [vmem:[%s200 + $0xf48] sm:$0xff]
        %v732 = vld [vmem:[%s200 + $0xf50] sm:$0xff]
        %v733 = vld [vmem:[%s200 + $0xf58] sm:$0xff]
        %v734 = vld [vmem:[%s200 + $0xf60] sm:$0xff]
        %v735 = vld [vmem:[%s200 + $0xf68] sm:$0xff]
        %v736 = vld [vmem:[%s200 + $0xf70] sm:$0xff]
        %v737 = vld [vmem:[%s200 + $0xf78] sm:$0xff]
        %v738 = vld [vmem:[%s200 + $0xf80] sm:$0xff]
        %v739 = vld [vmem:[%s200 + $0xf88] sm:$0xff]
        %v740 = vld [vmem:[%s200 + $0xf90] sm:$0xff]
        %v741 = vld [vmem:[%s200 + $0xf98] sm:$0xff]
        %v742 = vld [vmem:[%s200 + $0xfa0] sm:$0xff]
        %v743 = vld [vmem:[%s200 + $0xfa8] sm:$0xff]
        %v744 = vld [vmem:[%s200 + $0xfb0] sm:$0xff]
        %v745 = vld [vmem:[%s200 + $0xfb8] sm:$0xff]
        %v746 = vld [vmem:[%s200 + $0xfc0] sm:$0xff]
        %v747 = vld [vmem:[%s200 + $0xfc8] sm:$0xff]
        %v748 = vld [vmem:[%s200 + $0xfd0] sm:$0xff]
        %v749 = vld [vmem:[%s200 + $0xfd8] sm:$0xff]
        %v750 = vld [vmem:[%s200 + $0xfe0] sm:$0xff]
        %v751 = vld [vmem:[%s200 + $0xfe8] sm:$0xff]
        %v752 = vld [vmem:[%s200 + $0xff0] sm:$0xff]
        %v753 = vld [vmem:[%s200 + $0xff8] sm:$0xff]
        %v754 = vld [vmem:[%s209] sm:$0xf]
        %v756 = vlaneseq
        %v757 = vshrl.u32 %v756, 7
        %v758 = vsub.s32 0, %v757
        %v759 = vrot.slane %v754, %v758
        %v760 = vlaneseq
        %v761 = vshrl.u32 %v760, 7
        %v762 = vsub.s32 1, %v761
        %v763 = vrot.slane %v754, %v762
        %v764 = vlaneseq
        %v765 = vshrl.u32 %v764, 7
        %v766 = vsub.s32 2, %v765
        %v767 = vrot.slane %v754, %v766
        %v768 = vlaneseq
        %v769 = vshrl.u32 %v768, 7
        %v770 = vsub.s32 3, %v769
        %v771 = vrot.slane %v754, %v770
        %v778 = vcombine.high %v240, %v240
        %v780 = vunpack.c.l.s4 1983009808
        %v781 = vunpack.c.0.s8 %v780
        %v782 = vlaneseq
        %v783 = vshrl.u32 %v782, 7
        %v784 = vsub.s32 %v781, %v783
        %v785 = vrot.slane %v240, %v784
        %v787 = vunpack.c.l.s4 1983009808
        %v788 = vunpack.c.0.s8 %v787
        %v789 = vlaneseq
        %v790 = vshrl.u32 %v789, 7
        %v791 = vsub.s32 %v788, %v790
        %v792 = vrot.slane %v778, %v791
        %v793 = vcombine.high %v785, %v785
        %v794 = vcombine.high %v792, %v792
        %v795 = vcombine.high %v241, %v241
        %v797 = vunpack.c.l.s4 1983009808
        %v798 = vunpack.c.0.s8 %v797
        %v799 = vlaneseq
        %v800 = vshrl.u32 %v799, 7
        %v801 = vsub.s32 %v798, %v800
        %v802 = vrot.slane %v241, %v801
        %v804 = vunpack.c.l.s4 1983009808
        %v805 = vunpack.c.0.s8 %v804
        %v806 = vlaneseq
        %v807 = vshrl.u32 %v806, 7
        %v808 = vsub.s32 %v805, %v807
        %v809 = vrot.slane %v795, %v808
        %v810 = vcombine.high %v802, %v802
        %v811 = vcombine.high %v809, %v809
        %820 = vmatprep.subr.mxu0 %v303
        %821 = vmatpush1.msra.mxu0 %v302
        %822 = vmatprep.subr.mxu0 %v299
        %823 = vmatpush1.msra.mxu0 %v298
        %824 = vmatprep.subr.mxu0 %v295
        %825 = vmatpush1.msra.mxu0 %v294
        %826 = vmatprep.subr.mxu0 %v291
        %827 = vmatpush1.msra.mxu0 %v290
        %828 = vmatprep.subr.mxu0 %v287
        %829 = vmatpush1.msra.mxu0 %v286
        %830 = vmatprep.subr.mxu0 %v283
        %831 = vmatpush1.msra.mxu0 %v282
        %832 = vmatprep.subr.mxu0 %v279
        %833 = vmatpush1.msra.mxu0 %v278
        %834 = vmatprep.subr.mxu0 %v275
        %835 = vmatpush1.msra.mxu0 %v274
        %836 = vmatprep.subr.mxu0 %v271
        %837 = vmatpush1.msra.mxu0 %v270
        %838 = vmatprep.subr.mxu0 %v267
        %839 = vmatpush1.msra.mxu0 %v266
        %840 = vmatprep.subr.mxu0 %v263
        %841 = vmatpush1.msra.mxu0 %v262
        %842 = vmatprep.subr.mxu0 %v259
        %843 = vmatpush1.msra.mxu0 %v258
        %844 = vmatprep.subr.mxu0 %v255
        %845 = vmatpush1.msra.mxu0 %v254
        %846 = vmatprep.subr.mxu0 %v251
        %847 = vmatpush1.msra.mxu0 %v250
        %848 = vmatprep.subr.mxu0 %v247
        %849 = vmatpush1.msra.mxu0 %v246
        %850 = vmatprep.subr.mxu0 %v243
        %851 = vmatpush1.msra.mxu0 %v242
        %852 = vmatprep.subr.mxu0 %v367
        %853 = vmatpush2.msra.mxu0 %v366
        %854 = vmatprep.subr.mxu0 %v363
        %855 = vmatpush2.msra.mxu0 %v362
        %856 = vmatprep.subr.mxu0 %v359
        %857 = vmatpush2.msra.mxu0 %v358
        %858 = vmatprep.subr.mxu0 %v355
        %859 = vmatpush2.msra.mxu0 %v354
        %860 = vmatprep.subr.mxu0 %v351
        %861 = vmatpush2.msra.mxu0 %v350
        %862 = vmatprep.subr.mxu0 %v347
        %863 = vmatpush2.msra.mxu0 %v346
        %864 = vmatprep.subr.mxu0 %v343
        %865 = vmatpush2.msra.mxu0 %v342
        %866 = vmatprep.subr.mxu0 %v339
        %867 = vmatpush2.msra.mxu0 %v338
        %868 = vmatprep.subr.mxu0 %v335
        %869 = vmatpush2.msra.mxu0 %v334
        %870 = vmatprep.subr.mxu0 %v331
        %871 = vmatpush2.msra.mxu0 %v330
        %872 = vmatprep.subr.mxu0 %v327
        %873 = vmatpush2.msra.mxu0 %v326
        %874 = vmatprep.subr.mxu0 %v323
        %875 = vmatpush2.msra.mxu0 %v322
        %876 = vmatprep.subr.mxu0 %v319
        %877 = vmatpush2.msra.mxu0 %v318
        %878 = vmatprep.subr.mxu0 %v315
        %879 = vmatpush2.msra.mxu0 %v314
        %880 = vmatprep.subr.mxu0 %v311
        %881 = vmatpush2.msra.mxu0 %v310
        %882 = vmatprep.subr.mxu0 %v307
        %883 = vmatpush2.msra.mxu0 %v306
        %884 = vmatprep.mubr.f32.mxu0 %v793
        %885 = vmatmul.mubr.f32.gmra.mxu0 %v785
        %v886 = vpop.f32.mrf.mxu0
        %v887 = vadd.f32 %v759, %v886
        %v888 = vpop.f32.mrf.mxu0
        %v889 = vadd.f32 %v763, %v888
        %890 = vdwg.mxu0
        %891 = vmatprep.subr.mxu0 %v431
        %892 = vmatpush1.msra.mxu0 %v430
        %893 = vmatprep.subr.mxu0 %v427
        %894 = vmatpush1.msra.mxu0 %v426
        %895 = vmatprep.subr.mxu0 %v423
        %896 = vmatpush1.msra.mxu0 %v422
        %897 = vmatprep.subr.mxu0 %v419
        %898 = vmatpush1.msra.mxu0 %v418
        %899 = vmatprep.subr.mxu0 %v415
        %900 = vmatpush1.msra.mxu0 %v414
        %901 = vmatprep.subr.mxu0 %v411
        %902 = vmatpush1.msra.mxu0 %v410
        %903 = vmatprep.subr.mxu0 %v407
        %904 = vmatpush1.msra.mxu0 %v406
        %905 = vmatprep.subr.mxu0 %v403
        %906 = vmatpush1.msra.mxu0 %v402
        %907 = vmatprep.subr.mxu0 %v399
        %908 = vmatpush1.msra.mxu0 %v398
        %909 = vmatprep.subr.mxu0 %v395
        %910 = vmatpush1.msra.mxu0 %v394
        %911 = vmatprep.subr.mxu0 %v391
        %912 = vmatpush1.msra.mxu0 %v390
        %913 = vmatprep.subr.mxu0 %v387
        %914 = vmatpush1.msra.mxu0 %v386
        %915 = vmatprep.subr.mxu0 %v383
        %916 = vmatpush1.msra.mxu0 %v382
        %917 = vmatprep.subr.mxu0 %v379
        %918 = vmatpush1.msra.mxu0 %v378
        %919 = vmatprep.subr.mxu0 %v375
        %920 = vmatpush1.msra.mxu0 %v374
        %921 = vmatprep.subr.mxu0 %v371
        %922 = vmatpush1.msra.mxu0 %v370
        %923 = vmatprep.subr.mxu0 %v495
        %924 = vmatpush2.msra.mxu0 %v494
        %925 = vmatprep.subr.mxu0 %v491
        %926 = vmatpush2.msra.mxu0 %v490
        %927 = vmatprep.subr.mxu0 %v487
        %928 = vmatpush2.msra.mxu0 %v486
        %929 = vmatprep.subr.mxu0 %v483
        %930 = vmatpush2.msra.mxu0 %v482
        %931 = vmatprep.subr.mxu0 %v479
        %932 = vmatpush2.msra.mxu0 %v478
        %933 = vmatprep.subr.mxu0 %v475
        %934 = vmatpush2.msra.mxu0 %v474
        %935 = vmatprep.subr.mxu0 %v471
        %936 = vmatpush2.msra.mxu0 %v470
        %937 = vmatprep.subr.mxu0 %v467
        %938 = vmatpush2.msra.mxu0 %v466
        %939 = vmatprep.subr.mxu0 %v463
        %940 = vmatpush2.msra.mxu0 %v462
        %941 = vmatprep.subr.mxu0 %v459
        %942 = vmatpush2.msra.mxu0 %v458
        %943 = vmatprep.subr.mxu0 %v455
        %944 = vmatpush2.msra.mxu0 %v454
        %945 = vmatprep.subr.mxu0 %v451
        %946 = vmatpush2.msra.mxu0 %v450
        %947 = vmatprep.subr.mxu0 %v447
        %948 = vmatpush2.msra.mxu0 %v446
        %949 = vmatprep.subr.mxu0 %v443
        %950 = vmatpush2.msra.mxu0 %v442
        %951 = vmatprep.subr.mxu0 %v439
        %952 = vmatpush2.msra.mxu0 %v438
        %953 = vmatprep.subr.mxu0 %v435
        %954 = vmatpush2.msra.mxu0 %v434
        %955 = vmatprep.mubr.f32.mxu0 %v794
        %956 = vmatmul.mubr.f32.gmra.mxu0 %v792
        %v957 = vpop.f32.mrf.mxu0
        %v958 = vadd.f32 %v887, %v957
        %v959 = vpop.f32.mrf.mxu0
        %v960 = vadd.f32 %v889, %v959
        %961 = vdwg.mxu0
        %962 = vmatprep.subr.mxu0 %v559
        %963 = vmatpush1.msra.mxu0 %v558
        %964 = vmatprep.subr.mxu0 %v555
        %965 = vmatpush1.msra.mxu0 %v554
        %966 = vmatprep.subr.mxu0 %v551
        %967 = vmatpush1.msra.mxu0 %v550
        %968 = vmatprep.subr.mxu0 %v547
        %969 = vmatpush1.msra.mxu0 %v546
        %970 = vmatprep.subr.mxu0 %v543
        %971 = vmatpush1.msra.mxu0 %v542
        %972 = vmatprep.subr.mxu0 %v539
        %973 = vmatpush1.msra.mxu0 %v538
        %974 = vmatprep.subr.mxu0 %v535
        %975 = vmatpush1.msra.mxu0 %v534
        %976 = vmatprep.subr.mxu0 %v531
        %977 = vmatpush1.msra.mxu0 %v530
        %978 = vmatprep.subr.mxu0 %v527
        %979 = vmatpush1.msra.mxu0 %v526
        %980 = vmatprep.subr.mxu0 %v523
        %981 = vmatpush1.msra.mxu0 %v522
        %982 = vmatprep.subr.mxu0 %v519
        %983 = vmatpush1.msra.mxu0 %v518
        %984 = vmatprep.subr.mxu0 %v515
        %985 = vmatpush1.msra.mxu0 %v514
        %986 = vmatprep.subr.mxu0 %v511
        %987 = vmatpush1.msra.mxu0 %v510
        %988 = vmatprep.subr.mxu0 %v507
        %989 = vmatpush1.msra.mxu0 %v506
        %990 = vmatprep.subr.mxu0 %v503
        %991 = vmatpush1.msra.mxu0 %v502
        %992 = vmatprep.subr.mxu0 %v499
        %993 = vmatpush1.msra.mxu0 %v498
        %994 = vmatprep.subr.mxu0 %v623
        %995 = vmatpush2.msra.mxu0 %v622
        %996 = vmatprep.subr.mxu0 %v619
        %997 = vmatpush2.msra.mxu0 %v618
        %998 = vmatprep.subr.mxu0 %v615
        %999 = vmatpush2.msra.mxu0 %v614
        %1000 = vmatprep.subr.mxu0 %v611
        %1001 = vmatpush2.msra.mxu0 %v610
        %1002 = vmatprep.subr.mxu0 %v607
        %1003 = vmatpush2.msra.mxu0 %v606
        %1004 = vmatprep.subr.mxu0 %v603
        %1005 = vmatpush2.msra.mxu0 %v602
        %1006 = vmatprep.subr.mxu0 %v599
        %1007 = vmatpush2.msra.mxu0 %v598
        %1008 = vmatprep.subr.mxu0 %v595
        %1009 = vmatpush2.msra.mxu0 %v594
        %1010 = vmatprep.subr.mxu0 %v591
        %1011 = vmatpush2.msra.mxu0 %v590
        %1012 = vmatprep.subr.mxu0 %v587
        %1013 = vmatpush2.msra.mxu0 %v586
        %1014 = vmatprep.subr.mxu0 %v583
        %1015 = vmatpush2.msra.mxu0 %v582
        %1016 = vmatprep.subr.mxu0 %v579
        %1017 = vmatpush2.msra.mxu0 %v578
        %1018 = vmatprep.subr.mxu0 %v575
        %1019 = vmatpush2.msra.mxu0 %v574
        %1020 = vmatprep.subr.mxu0 %v571
        %1021 = vmatpush2.msra.mxu0 %v570
        %1022 = vmatprep.subr.mxu0 %v567
        %1023 = vmatpush2.msra.mxu0 %v566
        %1024 = vmatprep.subr.mxu0 %v563
        %1025 = vmatpush2.msra.mxu0 %v562
        %1026 = vmatprep.mubr.f32.mxu0 %v810
        %1027 = vmatmul.mubr.f32.gmra.mxu0 %v802
        %v1028 = vpop.f32.mrf.mxu0
        %v1029 = vadd.f32 %v958, %v1028
        %v1030 = vpop.f32.mrf.mxu0
        %v1031 = vadd.f32 %v960, %v1030
        %1032 = vdwg.mxu0
        %1033 = vmatprep.subr.mxu0 %v687
        %1034 = vmatpush1.msra.mxu0 %v686
        %1035 = vmatprep.subr.mxu0 %v683
        %1036 = vmatpush1.msra.mxu0 %v682
        %1037 = vmatprep.subr.mxu0 %v679
        %1038 = vmatpush1.msra.mxu0 %v678
        %1039 = vmatprep.subr.mxu0 %v675
        %1040 = vmatpush1.msra.mxu0 %v674
        %1041 = vmatprep.subr.mxu0 %v671
        %1042 = vmatpush1.msra.mxu0 %v670
        %1043 = vmatprep.subr.mxu0 %v667
        %1044 = vmatpush1.msra.mxu0 %v666
        %1045 = vmatprep.subr.mxu0 %v663
        %1046 = vmatpush1.msra.mxu0 %v662
        %1047 = vmatprep.subr.mxu0 %v659
        %1048 = vmatpush1.msra.mxu0 %v658
        %1049 = vmatprep.subr.mxu0 %v655
        %1050 = vmatpush1.msra.mxu0 %v654
        %1051 = vmatprep.subr.mxu0 %v651
        %1052 = vmatpush1.msra.mxu0 %v650
        %1053 = vmatprep.subr.mxu0 %v647
        %1054 = vmatpush1.msra.mxu0 %v646
        %1055 = vmatprep.subr.mxu0 %v643
        %1056 = vmatpush1.msra.mxu0 %v642
        %1057 = vmatprep.subr.mxu0 %v639
        %1058 = vmatpush1.msra.mxu0 %v638
        %1059 = vmatprep.subr.mxu0 %v635
        %1060 = vmatpush1.msra.mxu0 %v634
        %1061 = vmatprep.subr.mxu0 %v631
        %1062 = vmatpush1.msra.mxu0 %v630
        %1063 = vmatprep.subr.mxu0 %v627
        %1064 = vmatpush1.msra.mxu0 %v626
        %1065 = vmatprep.subr.mxu0 %v751
        %1066 = vmatpush2.msra.mxu0 %v750
        %1067 = vmatprep.subr.mxu0 %v747
        %1068 = vmatpush2.msra.mxu0 %v746
        %1069 = vmatprep.subr.mxu0 %v743
        %1070 = vmatpush2.msra.mxu0 %v742
        %1071 = vmatprep.subr.mxu0 %v739
        %1072 = vmatpush2.msra.mxu0 %v738
        %1073 = vmatprep.subr.mxu0 %v735
        %1074 = vmatpush2.msra.mxu0 %v734
        %1075 = vmatprep.subr.mxu0 %v731
        %1076 = vmatpush2.msra.mxu0 %v730
        %1077 = vmatprep.subr.mxu0 %v727
        %1078 = vmatpush2.msra.mxu0 %v726
        %1079 = vmatprep.subr.mxu0 %v723
        %1080 = vmatpush2.msra.mxu0 %v722
        %1081 = vmatprep.subr.mxu0 %v719
        %1082 = vmatpush2.msra.mxu0 %v718
        %1083 = vmatprep.subr.mxu0 %v715
        %1084 = vmatpush2.msra.mxu0 %v714
        %1085 = vmatprep.subr.mxu0 %v711
        %1086 = vmatpush2.msra.mxu0 %v710
        %1087 = vmatprep.subr.mxu0 %v707
        %1088 = vmatpush2.msra.mxu0 %v706
        %1089 = vmatprep.subr.mxu0 %v703
        %1090 = vmatpush2.msra.mxu0 %v702
        %1091 = vmatprep.subr.mxu0 %v699
        %1092 = vmatpush2.msra.mxu0 %v698
        %1093 = vmatprep.subr.mxu0 %v695
        %1094 = vmatpush2.msra.mxu0 %v694
        %1095 = vmatprep.subr.mxu0 %v691
        %1096 = vmatpush2.msra.mxu0 %v690
        %1097 = vmatprep.mubr.f32.mxu0 %v811
        %1098 = vmatmul.mubr.f32.gmra.mxu0 %v809
        %v1099 = vpop.f32.mrf.mxu0
        %v1100 = vadd.f32 %v1029, %v1099
        %v1101 = vpop.f32.mrf.mxu0
        %v1102 = vadd.f32 %v1031, %v1101
        %1103 = vdwg.mxu0
        %1104 = vmatprep.subr.mxu0 %v305
        %1105 = vmatpush1.msra.mxu0 %v304
        %1106 = vmatprep.subr.mxu0 %v301
        %1107 = vmatpush1.msra.mxu0 %v300
        %1108 = vmatprep.subr.mxu0 %v297
        %1109 = vmatpush1.msra.mxu0 %v296
        %1110 = vmatprep.subr.mxu0 %v293
        %1111 = vmatpush1.msra.mxu0 %v292
        %1112 = vmatprep.subr.mxu0 %v289
        %1113 = vmatpush1.msra.mxu0 %v288
        %1114 = vmatprep.subr.mxu0 %v285
        %1115 = vmatpush1.msra.mxu0 %v284
        %1116 = vmatprep.subr.mxu0 %v281
        %1117 = vmatpush1.msra.mxu0 %v280
        %1118 = vmatprep.subr.mxu0 %v277
        %1119 = vmatpush1.msra.mxu0 %v276
        %1120 = vmatprep.subr.mxu0 %v273
        %1121 = vmatpush1.msra.mxu0 %v272
        %1122 = vmatprep.subr.mxu0 %v269
        %1123 = vmatpush1.msra.mxu0 %v268
        %1124 = vmatprep.subr.mxu0 %v265
        %1125 = vmatpush1.msra.mxu0 %v264
        %1126 = vmatprep.subr.mxu0 %v261
        %1127 = vmatpush1.msra.mxu0 %v260
        %1128 = vmatprep.subr.mxu0 %v257
        %1129 = vmatpush1.msra.mxu0 %v256
        %1130 = vmatprep.subr.mxu0 %v253
        %1131 = vmatpush1.msra.mxu0 %v252
        %1132 = vmatprep.subr.mxu0 %v249
        %1133 = vmatpush1.msra.mxu0 %v248
        %1134 = vmatprep.subr.mxu0 %v245
        %1135 = vmatpush1.msra.mxu0 %v244
        %1136 = vmatprep.subr.mxu0 %v369
        %1137 = vmatpush2.msra.mxu0 %v368
        %1138 = vmatprep.subr.mxu0 %v365
        %1139 = vmatpush2.msra.mxu0 %v364
        %1140 = vmatprep.subr.mxu0 %v361
        %1141 = vmatpush2.msra.mxu0 %v360
        %1142 = vmatprep.subr.mxu0 %v357
        %1143 = vmatpush2.msra.mxu0 %v356
        %1144 = vmatprep.subr.mxu0 %v353
        %1145 = vmatpush2.msra.mxu0 %v352
        %1146 = vmatprep.subr.mxu0 %v349
        %1147 = vmatpush2.msra.mxu0 %v348
        %1148 = vmatprep.subr.mxu0 %v345
        %1149 = vmatpush2.msra.mxu0 %v344
        %1150 = vmatprep.subr.mxu0 %v341
        %1151 = vmatpush2.msra.mxu0 %v340
        %1152 = vmatprep.subr.mxu0 %v337
        %1153 = vmatpush2.msra.mxu0 %v336
        %1154 = vmatprep.subr.mxu0 %v333
        %1155 = vmatpush2.msra.mxu0 %v332
        %1156 = vmatprep.subr.mxu0 %v329
        %1157 = vmatpush2.msra.mxu0 %v328
        %1158 = vmatprep.subr.mxu0 %v325
        %1159 = vmatpush2.msra.mxu0 %v324
        %1160 = vmatprep.subr.mxu0 %v321
        %1161 = vmatpush2.msra.mxu0 %v320
        %1162 = vmatprep.subr.mxu0 %v317
        %1163 = vmatpush2.msra.mxu0 %v316
        %1164 = vmatprep.subr.mxu0 %v313
        %1165 = vmatpush2.msra.mxu0 %v312
        %1166 = vmatprep.subr.mxu0 %v309
        %1167 = vmatpush2.msra.mxu0 %v308
        %1168 = vmatprep.mubr.f32.mxu0 %v793
        %1169 = vmatmul.mubr.f32.gmra.mxu0 %v785
        %v1170 = vpop.f32.mrf.mxu0
        %v1171 = vadd.f32 %v767, %v1170
        %v1172 = vpop.f32.mrf.mxu0
        %v1173 = vadd.f32 %v771, %v1172
        %1174 = vdwg.mxu0
        %1175 = vmatprep.subr.mxu0 %v433
        %1176 = vmatpush1.msra.mxu0 %v432
        %1177 = vmatprep.subr.mxu0 %v429
        %1178 = vmatpush1.msra.mxu0 %v428
        %1179 = vmatprep.subr.mxu0 %v425
        %1180 = vmatpush1.msra.mxu0 %v424
        %1181 = vmatprep.subr.mxu0 %v421
        %1182 = vmatpush1.msra.mxu0 %v420
        %1183 = vmatprep.subr.mxu0 %v417
        %1184 = vmatpush1.msra.mxu0 %v416
        %1185 = vmatprep.subr.mxu0 %v413
        %1186 = vmatpush1.msra.mxu0 %v412
        %1187 = vmatprep.subr.mxu0 %v409
        %1188 = vmatpush1.msra.mxu0 %v408
        %1189 = vmatprep.subr.mxu0 %v405
        %1190 = vmatpush1.msra.mxu0 %v404
        %1191 = vmatprep.subr.mxu0 %v401
        %1192 = vmatpush1.msra.mxu0 %v400
        %1193 = vmatprep.subr.mxu0 %v397
        %1194 = vmatpush1.msra.mxu0 %v396
        %1195 = vmatprep.subr.mxu0 %v393
        %1196 = vmatpush1.msra.mxu0 %v392
        %1197 = vmatprep.subr.mxu0 %v389
        %1198 = vmatpush1.msra.mxu0 %v388
        %1199 = vmatprep.subr.mxu0 %v385
        %1200 = vmatpush1.msra.mxu0 %v384
        %1201 = vmatprep.subr.mxu0 %v381
        %1202 = vmatpush1.msra.mxu0 %v380
        %1203 = vmatprep.subr.mxu0 %v377
        %1204 = vmatpush1.msra.mxu0 %v376
        %1205 = vmatprep.subr.mxu0 %v373
        %1206 = vmatpush1.msra.mxu0 %v372
        %1207 = vmatprep.subr.mxu0 %v497
        %1208 = vmatpush2.msra.mxu0 %v496
        %1209 = vmatprep.subr.mxu0 %v493
        %1210 = vmatpush2.msra.mxu0 %v492
        %1211 = vmatprep.subr.mxu0 %v489
        %1212 = vmatpush2.msra.mxu0 %v488
        %1213 = vmatprep.subr.mxu0 %v485
        %1214 = vmatpush2.msra.mxu0 %v484
        %1215 = vmatprep.subr.mxu0 %v481
        %1216 = vmatpush2.msra.mxu0 %v480
        %1217 = vmatprep.subr.mxu0 %v477
        %1218 = vmatpush2.msra.mxu0 %v476
        %1219 = vmatprep.subr.mxu0 %v473
        %1220 = vmatpush2.msra.mxu0 %v472
        %1221 = vmatprep.subr.mxu0 %v469
        %1222 = vmatpush2.msra.mxu0 %v468
        %1223 = vmatprep.subr.mxu0 %v465
        %1224 = vmatpush2.msra.mxu0 %v464
        %1225 = vmatprep.subr.mxu0 %v461
        %1226 = vmatpush2.msra.mxu0 %v460
        %1227 = vmatprep.subr.mxu0 %v457
        %1228 = vmatpush2.msra.mxu0 %v456
        %1229 = vmatprep.subr.mxu0 %v453
        %1230 = vmatpush2.msra.mxu0 %v452
        %1231 = vmatprep.subr.mxu0 %v449
        %1232 = vmatpush2.msra.mxu0 %v448
        %1233 = vmatprep.subr.mxu0 %v445
        %1234 = vmatpush2.msra.mxu0 %v444
        %1235 = vmatprep.subr.mxu0 %v441
        %1236 = vmatpush2.msra.mxu0 %v440
        %1237 = vmatprep.subr.mxu0 %v437
        %1238 = vmatpush2.msra.mxu0 %v436
        %1239 = vmatprep.mubr.f32.mxu0 %v794
        %1240 = vmatmul.mubr.f32.gmra.mxu0 %v792
        %v1241 = vpop.f32.mrf.mxu0
        %v1242 = vadd.f32 %v1171, %v1241
        %v1243 = vpop.f32.mrf.mxu0
        %v1244 = vadd.f32 %v1173, %v1243
        %1245 = vdwg.mxu0
        %1246 = vmatprep.subr.mxu0 %v561
        %1247 = vmatpush1.msra.mxu0 %v560
        %1248 = vmatprep.subr.mxu0 %v557
        %1249 = vmatpush1.msra.mxu0 %v556
        %1250 = vmatprep.subr.mxu0 %v553
        %1251 = vmatpush1.msra.mxu0 %v552
        %1252 = vmatprep.subr.mxu0 %v549
        %1253 = vmatpush1.msra.mxu0 %v548
        %1254 = vmatprep.subr.mxu0 %v545
        %1255 = vmatpush1.msra.mxu0 %v544
        %1256 = vmatprep.subr.mxu0 %v541
        %1257 = vmatpush1.msra.mxu0 %v540
        %1258 = vmatprep.subr.mxu0 %v537
        %1259 = vmatpush1.msra.mxu0 %v536
        %1260 = vmatprep.subr.mxu0 %v533
        %1261 = vmatpush1.msra.mxu0 %v532
        %1262 = vmatprep.subr.mxu0 %v529
        %1263 = vmatpush1.msra.mxu0 %v528
        %1264 = vmatprep.subr.mxu0 %v525
        %1265 = vmatpush1.msra.mxu0 %v524
        %1266 = vmatprep.subr.mxu0 %v521
        %1267 = vmatpush1.msra.mxu0 %v520
        %1268 = vmatprep.subr.mxu0 %v517
        %1269 = vmatpush1.msra.mxu0 %v516
        %1270 = vmatprep.subr.mxu0 %v513
        %1271 = vmatpush1.msra.mxu0 %v512
        %1272 = vmatprep.subr.mxu0 %v509
        %1273 = vmatpush1.msra.mxu0 %v508
        %1274 = vmatprep.subr.mxu0 %v505
        %1275 = vmatpush1.msra.mxu0 %v504
        %1276 = vmatprep.subr.mxu0 %v501
        %1277 = vmatpush1.msra.mxu0 %v500
        %1278 = vmatprep.subr.mxu0 %v625
        %1279 = vmatpush2.msra.mxu0 %v624
        %1280 = vmatprep.subr.mxu0 %v621
        %1281 = vmatpush2.msra.mxu0 %v620
        %1282 = vmatprep.subr.mxu0 %v617
        %1283 = vmatpush2.msra.mxu0 %v616
        %1284 = vmatprep.subr.mxu0 %v613
        %1285 = vmatpush2.msra.mxu0 %v612
        %1286 = vmatprep.subr.mxu0 %v609
        %1287 = vmatpush2.msra.mxu0 %v608
        %1288 = vmatprep.subr.mxu0 %v605
        %1289 = vmatpush2.msra.mxu0 %v604
        %1290 = vmatprep.subr.mxu0 %v601
        %1291 = vmatpush2.msra.mxu0 %v600
        %1292 = vmatprep.subr.mxu0 %v597
        %1293 = vmatpush2.msra.mxu0 %v596
        %1294 = vmatprep.subr.mxu0 %v593
        %1295 = vmatpush2.msra.mxu0 %v592
        %1296 = vmatprep.subr.mxu0 %v589
        %1297 = vmatpush2.msra.mxu0 %v588
        %1298 = vmatprep.subr.mxu0 %v585
        %1299 = vmatpush2.msra.mxu0 %v584
        %1300 = vmatprep.subr.mxu0 %v581
        %1301 = vmatpush2.msra.mxu0 %v580
        %1302 = vmatprep.subr.mxu0 %v577
        %1303 = vmatpush2.msra.mxu0 %v576
        %1304 = vmatprep.subr.mxu0 %v573
        %1305 = vmatpush2.msra.mxu0 %v572
        %1306 = vmatprep.subr.mxu0 %v569
        %1307 = vmatpush2.msra.mxu0 %v568
        %1308 = vmatprep.subr.mxu0 %v565
        %1309 = vmatpush2.msra.mxu0 %v564
        %1310 = vmatprep.mubr.f32.mxu0 %v810
        %1311 = vmatmul.mubr.f32.gmra.mxu0 %v802
        %v1312 = vpop.f32.mrf.mxu0
        %v1313 = vadd.f32 %v1242, %v1312
        %v1314 = vpop.f32.mrf.mxu0
        %v1315 = vadd.f32 %v1244, %v1314
        %1316 = vdwg.mxu0
        %1317 = vmatprep.subr.mxu0 %v689
        %1318 = vmatpush1.msra.mxu0 %v688
        %1319 = vmatprep.subr.mxu0 %v685
        %1320 = vmatpush1.msra.mxu0 %v684
        %1321 = vmatprep.subr.mxu0 %v681
        %1322 = vmatpush1.msra.mxu0 %v680
        %1323 = vmatprep.subr.mxu0 %v677
        %1324 = vmatpush1.msra.mxu0 %v676
        %1325 = vmatprep.subr.mxu0 %v673
        %1326 = vmatpush1.msra.mxu0 %v672
        %1327 = vmatprep.subr.mxu0 %v669
        %1328 = vmatpush1.msra.mxu0 %v668
        %1329 = vmatprep.subr.mxu0 %v665
        %1330 = vmatpush1.msra.mxu0 %v664
        %1331 = vmatprep.subr.mxu0 %v661
        %1332 = vmatpush1.msra.mxu0 %v660
        %1333 = vmatprep.subr.mxu0 %v657
        %1334 = vmatpush1.msra.mxu0 %v656
        %1335 = vmatprep.subr.mxu0 %v653
        %1336 = vmatpush1.msra.mxu0 %v652
        %1337 = vmatprep.subr.mxu0 %v649
        %1338 = vmatpush1.msra.mxu0 %v648
        %1339 = vmatprep.subr.mxu0 %v645
        %1340 = vmatpush1.msra.mxu0 %v644
        %1341 = vmatprep.subr.mxu0 %v641
        %1342 = vmatpush1.msra.mxu0 %v640
        %1343 = vmatprep.subr.mxu0 %v637
        %1344 = vmatpush1.msra.mxu0 %v636
        %1345 = vmatprep.subr.mxu0 %v633
        %1346 = vmatpush1.msra.mxu0 %v632
        %1347 = vmatprep.subr.mxu0 %v629
        %1348 = vmatpush1.msra.mxu0 %v628
        %1349 = vmatprep.subr.mxu0 %v753
        %1350 = vmatpush2.msra.mxu0 %v752
        %1351 = vmatprep.subr.mxu0 %v749
        %1352 = vmatpush2.msra.mxu0 %v748
        %1353 = vmatprep.subr.mxu0 %v745
        %1354 = vmatpush2.msra.mxu0 %v744
        %1355 = vmatprep.subr.mxu0 %v741
        %1356 = vmatpush2.msra.mxu0 %v740
        %1357 = vmatprep.subr.mxu0 %v737
        %1358 = vmatpush2.msra.mxu0 %v736
        %1359 = vmatprep.subr.mxu0 %v733
        %1360 = vmatpush2.msra.mxu0 %v732
        %1361 = vmatprep.subr.mxu0 %v729
        %1362 = vmatpush2.msra.mxu0 %v728
        %1363 = vmatprep.subr.mxu0 %v725
        %1364 = vmatpush2.msra.mxu0 %v724
        %1365 = vmatprep.subr.mxu0 %v721
        %1366 = vmatpush2.msra.mxu0 %v720
        %1367 = vmatprep.subr.mxu0 %v717
        %1368 = vmatpush2.msra.mxu0 %v716
        %1369 = vmatprep.subr.mxu0 %v713
        %1370 = vmatpush2.msra.mxu0 %v712
        %1371 = vmatprep.subr.mxu0 %v709
        %1372 = vmatpush2.msra.mxu0 %v708
        %1373 = vmatprep.subr.mxu0 %v705
        %1374 = vmatpush2.msra.mxu0 %v704
        %1375 = vmatprep.subr.mxu0 %v701
        %1376 = vmatpush2.msra.mxu0 %v700
        %1377 = vmatprep.subr.mxu0 %v697
        %1378 = vmatpush2.msra.mxu0 %v696
        %1379 = vmatprep.subr.mxu0 %v693
        %1380 = vmatpush2.msra.mxu0 %v692
        %1381 = vmatprep.mubr.f32.mxu0 %v811
        %1382 = vmatmul.mubr.f32.gmra.mxu0 %v809
        %v1383 = vpop.f32.mrf.mxu0
        %v1384 = vadd.f32 %v1313, %v1383
        %v1385 = vpop.f32.mrf.mxu0
        %v1386 = vadd.f32 %v1315, %v1385
        %1387 = vdwg.mxu0
        %v1392 = vcombine.low %v1100, %v1102
        %v1393 = vcombine.low %v1384, %v1386
        %v1395 = vunpack.c.l.s4 1983009808
        %v1396 = vunpack.c.0.s8 %v1395
        %v1397 = vlaneseq
        %v1398 = vshrl.u32 %v1397, 7
        %v1399 = vsub.s32 %v1396, %v1398
        %v1400 = vrot.slane %v1392, %v1399
        %v1402 = vunpack.c.l.s4 1983009808
        %v1403 = vunpack.c.0.s8 %v1402
        %v1404 = vlaneseq
        %v1405 = vshrl.u32 %v1404, 7
        %v1406 = vsub.s32 %v1403, %v1405
        %v1407 = vrot.slane %v1393, %v1406
        %v1408 = vcombine.low %v1400, %v1407
        %1410 = vst [vmem:[%s236] sm:$0xff] %v1408
        %s1411 = sand.u32 %s102, 1
        %s1412 = scalar_lea.sflag [#allocation4], %s1411
        %s1413 = sand.u32 %s102, 1
        %s1414 = smul.addr %s1413, 8
        %s1415 = scalar_lea.vmem [#allocation8], %s1414
        // Predicated region
        $region45: #{_pallas_linear.1} parent=31 // pred_check
          %p1416 = pneg %p112
        $region46: #{_pallas_linear.1} parent=31 // pred_check_branch
          %1418 = sbr.rel (%p1416) target = $region48
        $region47: #{_pallas_linear.1} parent=31 // pred_region
          %s1419 = smul.u32 4, %s21
          %s1421 = ssub.s32 128, 128
          %1422 = vsyncadd %s1412, %s1421
          %s1423 = smul.addr %s1419, 32
          %s1424 = scalar_lea.hbm %s3, %s1423
          %s1426 = sshll.u32 %s1415, 4
          %s1427 = int_to_ptr.vmem [resolvable:$true] %s1426
          %1429 = dma.vmem_to_hbm [thread:$0]  %s1427, 128, %s1424, %s1412
        $region48: #{_pallas_linear.1} parent=31 // pred_fallthru
          _
      $region32: #{_pallas_linear.1} parent=5 // pred_fallthru
        _
      %p1430 = scmp.le.s32.totalorder 2, %s16
      // Predicated region
      $region49: #{_pallas_linear.1} parent=5 // pred_check
        %p1431 = pneg %p1430
      $region50: #{_pallas_linear.1} parent=5 // pred_check_branch
        %1433 = sbr.rel (%p1431) target = $region52
      $region51: #{_pallas_linear.1} parent=5 // pred_region
        %s1434 = ssub.s32 %s16, 2
        // Predicated region
        $region53: #{_pallas_linear.1} parent=51 // pred_check
          %p1435 = pneg %p118
        $region54: #{_pallas_linear.1} parent=51 // pred_check_branch
          %1437 = sbr.rel (%p1435) target = $region56
        $region55: #{_pallas_linear.1} parent=51 // pred_region
          %s1438 = sand.u32 %s103, 1
          %s1439 = scalar_lea.sflag [#allocation4], %s1438
          %s1440 = sand.u32 %s103, 1
          %s1441 = smul.addr %s1440, 8
          %s1442 = scalar_lea.vmem [#allocation8], %s1441
          %1443 = dma.done %s1439, 128
        $region56: #{_pallas_linear.1} parent=51 // pred_fallthru
          _
      $region52: #{_pallas_linear.1} parent=5 // pred_fallthru
        _
    $region6: #{_pallas_linear.1} parent=1 // loop_footer
      %s20 = sadd.s32 1, %s16
    $region7: #{_pallas_linear.1} parent=1 // loop_footer_branch
      %15 = sbr.rel target = $region3
    $region8: #{_pallas_linear.1} parent=1 // loop_exit
      _
    %1444 = vsyncpa [#allocation3], 1
    %s1445 = scalar_lea.sflag [#allocation3], 1
    %1446 = vsyncpa %s1445, 1
    %1447 = vsyncpa [#allocation6], 1
    %s1448 = scalar_lea.sflag [#allocation6], 1
    %1449 = vsyncpa %s1448, 1
    %1450 = vsyncpa [#allocation4], 1
    %s1451 = scalar_lea.sflag [#allocation4], 1
    %1452 = vsyncpa %s1451, 1

</llo_original>
